<compile_context>
chip_gen: v7x
topology: tpu7x:2x2x1
jax: 0.10.0
libtpu: 0.0.40
codegen_flags: <defaults>
</compile_context>

<pallas_src>
import jax
import jax.numpy as jnp
import numpy as np
from jax.experimental import pallas as pl
from jax.experimental.pallas import tpu as pltpu


def qa_proj_kernel(h_ref, w_ref, bias_ref, out_ref):
    """QA head projection for one (1, S_TILE, H) hidden tile, lane-dense output.

    h_ref:    (1, S_TILE, H) bf16   hidden-state tile
    w_ref:    (2, H)         bf16   qa_outputs.weight
    bias_ref: (2, 1)         f32    qa_outputs.bias (broadcast over lanes)
    out_ref:  (1, 2, S_TILE) bf16   [start; end] logits, sequence on lanes
    """
    h = h_ref[0]            # (S_TILE, H) bf16 -- no f32 upcast of the big tile
    w = w_ref[...]          # (2, H) bf16

    # (2, S_TILE) = w @ h^T : one bf16 MXU contraction with f32 accumulation.
    acc = jax.lax.dot_general(
        w, h,
        dimension_numbers=(((1,), (1,)), ((), ())),
        preferred_element_type=jnp.float32)

    # Bias add in the f32 accumulator (matches torch bf16 Linear: cast last).
    out_ref[0] = (acc + bias_ref[...]).astype(out_ref.dtype)


def _round_up(x, m):
    return ((x + m - 1) // m) * m


def _pick_s_tile(seq_len, hidden, dtype_bytes=2, tile_budget_bytes=8 * 1024 * 1024):
    """Largest power-of-two sequence tile in [128, 2048] such that one hidden
    tile stays within ~8 MiB (double-buffered: 16 MiB, safe for v7x's VMEM)."""
    s_pad = _round_up(seq_len, 128)
    t = 2048
    while t > 128 and (t * hidden * dtype_bytes > tile_budget_bytes or t > s_pad):
        t //= 2
    return t


@jax.jit
def qa_head_pallas(hidden_states, w, b):
    """qa_outputs(hidden_states) -> (start_logits, end_logits), each (B, S) bf16."""
    B, S, H = hidden_states.shape
    s_tile = _pick_s_tile(S, H)
    S_pad = _round_up(S, s_tile)
    if S_pad != S:
        # Pad the sequence axis to a tile multiple; padded logits are dropped
        # below.  (Never fall back to a single full-sequence block.)
        hidden_states = jnp.pad(hidden_states, ((0, 0), (0, S_pad - S), (0, 0)))
    grid = (B, S_pad // s_tile)

    cost = pl.CostEstimate(
        flops=4 * B * S_pad * H,                              # 2 * 2 * S * H
        transcendentals=0,
        bytes_accessed=B * S_pad * H * 2 + B * 2 * S_pad * 2 + 2 * H * 2,
    )

    logits = pl.pallas_call(
        qa_proj_kernel,
        grid=grid,
        in_specs=[
            pl.BlockSpec((1, s_tile, H), lambda bi, si: (bi, si, 0)),
            pl.BlockSpec((2, H), lambda bi, si: (0, 0)),
            pl.BlockSpec((2, 1), lambda bi, si: (0, 0)),
        ],
        out_specs=pl.BlockSpec((1, 2, s_tile), lambda bi, si: (bi, 0, si)),
        out_shape=jax.ShapeDtypeStruct((B, 2, S_pad), jnp.bfloat16),
        compiler_params=pltpu.CompilerParams(
            # TODO(synk): on v7x use pltpu.CORE_PARALLEL on the leading axis
            # (or pl.core_map over a 2-core tensorcore mesh) to engage both TCs.
            dimension_semantics=("parallel", "parallel"),
            vmem_limit_bytes=32 * 1024 * 1024,
        ),
        cost_estimate=cost,
    )(hidden_states, w, b.astype(jnp.float32).reshape(2, 1))

    # torch: logits.split(1, dim=-1) + squeeze(-1).  With the lane-dense
    # (B, 2, S_pad) layout this is two row slices of a tiny array in plain XLA.
    return logits[:, 0, :S], logits[:, 1, :S]


def _cross_entropy(logits, targets, ignore_index=-100):
    """nn.CrossEntropyLoss() over the sequence axis (mean, ignore_index=-100).

    Precision contract: loss is computed from the bf16-rounded logits upcast to
    f32 (the torch module also feeds bf16 logits to CrossEntropyLoss).
    """
    lg = logits.astype(jnp.float32)                        # (B, S)
    lse = jax.nn.logsumexp(lg, axis=-1)                    # (B,)
    valid = targets != ignore_index
    # torch would raise on out-of-range targets; clamp defensively instead.
    safe_t = jnp.clip(jnp.where(valid, targets, 0), 0, lg.shape[-1] - 1)
    picked = jnp.take_along_axis(lg, safe_t[:, None], axis=-1)[:, 0]
    per_example = jnp.where(valid, lse - picked, 0.0)
    # NOTE: all-ignored batches give 0/0 = NaN, matching torch's mean reduction.
    return jnp.sum(per_example) / jnp.sum(valid.astype(jnp.float32))


@jax.jit
def qa_loss(start_logits, end_logits, labels):
    start_loss = _cross_entropy(start_logits, labels[:, 0])
    end_loss = _cross_entropy(end_logits, labels[:, 1])
    return ((start_loss + end_loss) * 0.5).astype(start_logits.dtype)


def custom_llama_qa_forward(params, input_ids, attention_mask=None, labels=None):
    """Mirrors CustomLlamaQA.forward."""
    del attention_mask  # only consumed by the (stubbed) base_model
    # TODO(synk): real Llama-3.2-1B forward not replicated; embedding lookup
    # stands in for base_model(...).hidden_states[-1].
    hidden_states = params["emb_table"][input_ids].astype(jnp.bfloat16)  # (B,S,H)

    start_logits, end_logits = qa_head_pallas(
        hidden_states, params["qa_w"], params["qa_b"])

    if labels is None:
        # Matches the module's else-branch: tensor(0.0, dtype=start_logits.dtype)
        loss = jnp.asarray(0.0, dtype=start_logits.dtype)
    else:
        loss = qa_loss(start_logits, end_logits, labels)

    return {"loss": loss, "start_logits": start_logits, "end_logits": end_logits}


if __name__ == "__main__":
    # Small but multi-tile shapes: grid = (B, S_pad // S_TILE) = (2, 2).
    B, S, H, VOCAB = 2, 4096, 64, 256

    key = jax.random.PRNGKey(0)
    k_emb, k_w, k_b, k_ids, k_lab = jax.random.split(key, 5)

    params = {
        # stand-in "base model": deterministic embedding table
        "emb_table": (jax.random.normal(k_emb, (VOCAB, H), jnp.float32) * 0.5
                      ).astype(jnp.bfloat16),
        # qa_outputs = nn.Linear(hidden_size, 2, dtype=bf16)
        "qa_w": (jax.random.normal(k_w, (2, H), jnp.float32) * 0.02
                 ).astype(jnp.bfloat16),
        "qa_b": jnp.zeros((2,), jnp.bfloat16),
    }

    input_ids = jax.random.randint(k_ids, (B, S), 0, VOCAB, dtype=jnp.int32)
    attention_mask = jnp.ones((B, S), dtype=jnp.int32)
    labels = jax.random.randint(k_lab, (B, 2), 0, S, dtype=jnp.int32)

    out = custom_llama_qa_forward(params, input_ids, attention_mask, labels)
    jax.block_until_ready(out)

    assert out["start_logits"].shape == (B, S)
    assert out["end_logits"].shape == (B, S)
    assert out["start_logits"].dtype == jnp.bfloat16
    assert out["end_logits"].dtype == jnp.bfloat16
    assert out["loss"].shape == ()

    # Correctness check vs a plain-JAX reference of the QA head.
    hs = params["emb_table"][input_ids].astype(jnp.bfloat16)
    ref = (hs.astype(jnp.float32) @ params["qa_w"].astype(jnp.float32).T
           + params["qa_b"].astype(jnp.float32)).astype(jnp.bfloat16)
    np.testing.assert_allclose(
        np.asarray(out["start_logits"], dtype=np.float32),
        np.asarray(ref[:, :, 0], dtype=np.float32), rtol=5e-2, atol=5e-3)
    np.testing.assert_allclose(
        np.asarray(out["end_logits"], dtype=np.float32),
        np.asarray(ref[:, :, 1], dtype=np.float32), rtol=5e-2, atol=5e-3)

    print("KERNEL_OK")
</pallas_src>

<mosaic_0001>
module attributes {stable_mosaic.version = 11 : i64} {
  func.func @qa_proj_kernel(%arg0: i32, %arg1: i32, %arg2: memref<1x2048x64xbf16, #tpu.memory_space<vmem>>, %arg3: memref<2x64xbf16, #tpu.memory_space<vmem>>, %arg4: memref<2x1xf32, #tpu.memory_space<vmem>>, %arg5: memref<1x2x2048xbf16, #tpu.memory_space<vmem>>) attributes {dimension_semantics = [#tpu.dimension_semantics<parallel>, #tpu.dimension_semantics<parallel>], iteration_bounds = array<i64: 2, 2>, scalar_prefetch = 0 : i64, scratch_operands = 0 : i64, tpu.core_type = #tpu.core_type<tc>, window_params = [{transform_indices = @transform_0, window_bounds = array<i64: 1, 2048, 64>}, {pipeline_mode = #tpu.pipeline_mode<synchronous>, transform_indices = @transform_1, window_bounds = array<i64: 2, 64>}, {pipeline_mode = #tpu.pipeline_mode<synchronous>, transform_indices = @transform_2, window_bounds = array<i64: 2, 1>}, {transform_indices = @transform_3, window_bounds = array<i64: 1, 2, 2048>}]} {
    %c0 = arith.constant 0 : index
    %c0_0 = arith.constant 0 : index
    %c0_1 = arith.constant 0 : index
    %0 = vector.load %arg2[%c0, %c0_0, %c0_1] : memref<1x2048x64xbf16, #tpu.memory_space<vmem>>, vector<1x2048x64xbf16>
    %1 = vector.shape_cast %0 : vector<1x2048x64xbf16> to vector<2048x64xbf16>
    %c0_2 = arith.constant 0 : index
    %c0_3 = arith.constant 0 : index
    %2 = vector.load %arg3[%c0_2, %c0_3] : memref<2x64xbf16, #tpu.memory_space<vmem>>, vector<2x64xbf16>
    %cst = arith.constant dense<0.000000e+00> : vector<2x2048xf32>
    %3 = tpu.matmul %2, %1, %cst {dimension_numbers = #tpu.dot_dimension_numbers<[1], [1], [0], [0], [0, 0, 1, 0], [], []>} : vector<2x64xbf16>, vector<2048x64xbf16>, vector<2x2048xf32> -> vector<2x2048xf32>
    %c0_4 = arith.constant 0 : index
    %c0_5 = arith.constant 0 : index
    %4 = vector.load %arg4[%c0_4, %c0_5] : memref<2x1xf32, #tpu.memory_space<vmem>>, vector<2x1xf32>
    %5 = vector.broadcast %4 : vector<2x1xf32> to vector<2x2048xf32>
    %6 = arith.addf %3, %5 : vector<2x2048xf32>
    %7 = arith.truncf %6 : vector<2x2048xf32> to vector<2x2048xbf16>
    %c0_6 = arith.constant 0 : index
    %c0_7 = arith.constant 0 : index
    %c0_8 = arith.constant 0 : index
    %8 = vector.load %arg5[%c0_6, %c0_7, %c0_8] : memref<1x2x2048xbf16, #tpu.memory_space<vmem>>, vector<1x2x2048xbf16>
    %9 = vector.shape_cast %8 : vector<1x2x2048xbf16> to vector<2x2048xbf16>
    %10 = vector.shape_cast %7 : vector<2x2048xbf16> to vector<1x2x2048xbf16>
    tpu.vector_store %arg5[%c0_6, %c0_7, %c0_8], %10 {strides = array<i32>} : memref<1x2x2048xbf16, #tpu.memory_space<vmem>>, vector<1x2x2048xbf16>,
    return
  }
  func.func @transform_0(%arg0: i32, %arg1: i32) -> (i32, i32, i32) {
    %c0_i32 = arith.constant 0 : i32
    %c0_i32_0 = arith.constant 0 : i32
    return %arg0, %arg1, %c0_i32 : i32, i32, i32
  }
  func.func @transform_1(%arg0: i32, %arg1: i32) -> (i32, i32) {
    %c0_i32 = arith.constant 0 : i32
    %c0_i32_0 = arith.constant 0 : i32
    %c0_i32_1 = arith.constant 0 : i32
    return %c0_i32, %c0_i32_0 : i32, i32
  }
  func.func @transform_2(%arg0: i32, %arg1: i32) -> (i32, i32) {
    %c0_i32 = arith.constant 0 : i32
    %c0_i32_0 = arith.constant 0 : i32
    %c0_i32_1 = arith.constant 0 : i32
    return %c0_i32, %c0_i32_0 : i32, i32
  }
  func.func @transform_3(%arg0: i32, %arg1: i32) -> (i32, i32, i32) {
    %c0_i32 = arith.constant 0 : i32
    %c0_i32_0 = arith.constant 0 : i32
    return %arg0, %c0_i32, %arg1 : i32, i32, i32
  }
}

</mosaic_0001>

<llo_original>
// kernel: qa_head_pallas.1
$region0: #{qa_head_pallas.1}
  #allocation0 [shape = 'u32[]', space=smem, size = 0x4, offset = 0x4, fixed_abs, tag = 'smem constant byte address 0x4 - core index']
  #allocation1 [shape = 'u32[144,128]{1,0:T(1,128)}', space=vmem, size = 0x12000, scoped, tag = 'internal scratch']
  %s0 = inlined_call_operand.vmem [shape: bf16[2,4096,64], index: 0, kind: input, shape index: {}]
  %s1 = inlined_call_operand.vmem [shape: bf16[2,64], index: 1, kind: input, shape index: {}]
  %s2 = inlined_call_operand.vmem [shape: f32[2,1], index: 2, kind: input, shape index: {}]
  %s3 = inlined_call_operand.vmem [shape: bf16[2,2,4096], index: 3, kind: output, shape index: {}]
  %s4 = sld [smem:[#allocation0]]
  $region45: #{qa_head_pallas.1} parent=0
    _
  %s6 = ssub.s32 1, %s4
  %s7 = scalar_select 0, %s6, %s4
  loop: start=0, step=1, limit=6
  $region2: #{qa_head_pallas.1} parent=0 // loop_pre_header
    _
  $region3: #{qa_head_pallas.1} parent=0 // loop_header
    %s9 = sphi 0, %s13
    %p10 = scmp.ge.s32.totalorder %s9, 6
    %s16 = sphi 0, %s28
    %s17 = sphi 0, %s24
    %s18 = sphi 0, %s16
    %s19 = sphi 0, %s17
    %s20 = sphi 0, %s18
    %s21 = sphi 0, %s19
    %s33 = sphi 0, %s35
    %s36 = sphi 0, %s33
    %s37 = sphi 0, %s36
    %s53 = sphi 0, %s37
    %s57 = sphi 0, %s57
    %s59 = sphi 0, %s57
    %s60 = sphi 0, %s59
    %s74 = sphi 0, %s60
    %s78 = sphi 0, %s78
    %s80 = sphi 0, %s78
    %s81 = sphi 0, %s80
    %s95 = sphi 0, %s81
    %s103 = sphi 0, %s105
    %s106 = sphi 0, %s103
    %s107 = sphi 0, %s106
    %s123 = sphi 0, %s107
  $region4: #{qa_head_pallas.1} parent=0 // loop_header_branch
    %12 = sbr.rel (%p10) target = $region8
  $region5: #{qa_head_pallas.1} parent=0 // loop_body
    %s14 = ssub.s32 %s9, 1
    %s15 = ssub.s32 %s9, 2
    %s22 = sadd.s32 1, %s17
    %p23 = scmp.ge.s32.totalorder %s22, 2
    %s24 = scalar_select %p23, 0, %s22
    %s25 = sadd.s32 1, %s16
    %s26 = scalar_select %p23, %s25, %s16
    %p27 = scmp.ge.s32.totalorder %s26, 2
    %s28 = scalar_select %p27, 0, %s26
    %s29 = ssub.s32 %s16, %s28
    %s30 = ssub.s32 %s17, %s24
    %s31 = sor.u32 %s29, %s30
    %p32 = scmp.eq.s32.totalorder %s31, 0
    %s34 = sadd.s32 %s33, 1
    %s35 = scalar_select %p32, %s33, %s34
    %p38 = pneg %p32
    %p39 = scmp.eq.s32.totalorder %s9, 3
    %p40 = por %p38, %p39
    %p41 = scmp.ne.s32.totalorder %s33, %s36
    %p42 = scmp.eq.s32.totalorder %s9, 0
    %p43 = por %p41, %p42
    %p44 = scmp.ne.s32.totalorder %s33, %s36
    %p45 = scmp.eq.s32.totalorder %s14, 3
    %p46 = por %p44, %p45
    %p47 = scmp.ne.s32.totalorder %s36, %s37
    %p48 = scmp.eq.s32.totalorder %s14, 0
    %p49 = por %p47, %p48
    %p50 = scmp.ne.s32.totalorder %s36, %s37
    %p51 = scmp.eq.s32.totalorder %s15, 3
    %p52 = por %p50, %p51
    %p54 = scmp.ne.s32.totalorder %s37, %s53
    %p55 = scmp.eq.s32.totalorder %s15, 0
    %p56 = por %p54, %p55
    %s58 = sadd.s32 %s57, 1
    %p61 = scmp.eq.s32.totalorder %s9, 3
    %p62 = scmp.ne.s32.totalorder %s57, %s59
    %p63 = scmp.eq.s32.totalorder %s9, 0
    %p64 = por %p62, %p63
    %p65 = scmp.ne.s32.totalorder %s57, %s59
    %p66 = scmp.eq.s32.totalorder %s14, 3
    %p67 = por %p65, %p66
    %p68 = scmp.ne.s32.totalorder %s59, %s60
    %p69 = scmp.eq.s32.totalorder %s14, 0
    %p70 = por %p68, %p69
    %p71 = scmp.ne.s32.totalorder %s59, %s60
    %p72 = scmp.eq.s32.totalorder %s15, 3
    %p73 = por %p71, %p72
    %p75 = scmp.ne.s32.totalorder %s60, %s74
    %p76 = scmp.eq.s32.totalorder %s15, 0
    %p77 = por %p75, %p76
    %s79 = sadd.s32 %s78, 1
    %p82 = scmp.eq.s32.totalorder %s9, 3
    %p83 = scmp.ne.s32.totalorder %s78, %s80
    %p84 = scmp.eq.s32.totalorder %s9, 0
    %p85 = por %p83, %p84
    %p86 = scmp.ne.s32.totalorder %s78, %s80
    %p87 = scmp.eq.s32.totalorder %s14, 3
    %p88 = por %p86, %p87
    %p89 = scmp.ne.s32.totalorder %s80, %s81
    %p90 = scmp.eq.s32.totalorder %s14, 0
    %p91 = por %p89, %p90
    %p92 = scmp.ne.s32.totalorder %s80, %s81
    %p93 = scmp.eq.s32.totalorder %s15, 3
    %p94 = por %p92, %p93
    %p96 = scmp.ne.s32.totalorder %s81, %s95
    %p97 = scmp.eq.s32.totalorder %s15, 0
    %p98 = por %p96, %p97
    %s99 = ssub.s32 %s16, %s28
    %s100 = ssub.s32 %s17, %s24
    %s101 = sor.u32 %s99, %s100
    %p102 = scmp.eq.s32.totalorder %s101, 0
    %s104 = sadd.s32 %s103, 1
    %s105 = scalar_select %p102, %s103, %s104
    %p108 = pneg %p102
    %p109 = scmp.eq.s32.totalorder %s9, 3
    %p110 = por %p108, %p109
    %p111 = scmp.ne.s32.totalorder %s103, %s106
    %p112 = scmp.eq.s32.totalorder %s9, 0
    %p113 = por %p111, %p112
    %p114 = scmp.ne.s32.totalorder %s103, %s106
    %p115 = scmp.eq.s32.totalorder %s14, 3
    %p116 = por %p114, %p115
    %p117 = scmp.ne.s32.totalorder %s106, %s107
    %p118 = scmp.eq.s32.totalorder %s14, 0
    %p119 = por %p117, %p118
    %p120 = scmp.ne.s32.totalorder %s106, %s107
    %p121 = scmp.eq.s32.totalorder %s15, 3
    %p122 = por %p120, %p121
    %p124 = scmp.ne.s32.totalorder %s107, %s123
    %p125 = scmp.eq.s32.totalorder %s15, 0
    %p126 = por %p124, %p125
    %p127 = scmp.le.s32.totalorder 1, %s9
    %p128 = scmp.lt.s32.totalorder %s9, 5
    %p129 = pnand %p127, %p128
    %p130 = pneg %p129
    // Predicated region
    $region9: #{qa_head_pallas.1} parent=5 // pred_check
      _
    $region10: #{qa_head_pallas.1} parent=5 // pred_check_branch
      %132 = sbr.rel (%p129) target = $region12
    $region11: #{qa_head_pallas.1} parent=5 // pred_region
      %s133 = ssub.s32 %s9, 1
      // Predicated region
      $region13: #{qa_head_pallas.1} parent=11 // pred_check
        %p134 = pneg %p70
      $region14: #{qa_head_pallas.1} parent=11 // pred_check_branch
        %136 = sbr.rel (%p134) target = $region16
      $region15: #{qa_head_pallas.1} parent=11 // pred_region
        _
      $region16: #{qa_head_pallas.1} parent=11 // pred_fallthru
        _
      // Predicated region
      $region17: #{qa_head_pallas.1} parent=11 // pred_check
        %p137 = pneg %p91
      $region18: #{qa_head_pallas.1} parent=11 // pred_check_branch
        %139 = sbr.rel (%p137) target = $region20
      $region19: #{qa_head_pallas.1} parent=11 // pred_region
        _
      $region20: #{qa_head_pallas.1} parent=11 // pred_fallthru
        _
    $region12: #{qa_head_pallas.1} parent=5 // pred_fallthru
      _
    %p140 = scmp.lt.s32.totalorder %s9, 4
    // Predicated region
    $region21: #{qa_head_pallas.1} parent=5 // pred_check
      %p141 = pneg %p140
    $region22: #{qa_head_pallas.1} parent=5 // pred_check_branch
      %143 = sbr.rel (%p141) target = $region24
    $region23: #{qa_head_pallas.1} parent=5 // pred_region
      // Predicated region
      $region25: #{qa_head_pallas.1} parent=23 // pred_check
        %p144 = pneg %p43
      $region26: #{qa_head_pallas.1} parent=23 // pred_check_branch
        %146 = sbr.rel (%p144) target = $region28
      $region27: #{qa_head_pallas.1} parent=23 // pred_region
        %s147 = smul.u32 256, %s17
        %p148 = scmp.lt.s32.totalorder %s16, 1
        %s149 = scalar_select %p148, %s16, 1
        %p150 = scmp.lt.s32.totalorder %s147, 511
        %s151 = scalar_select %p150, %s147, 511
        %s152 = smul.addr %s149, 512
        %s153 = sadd.s32 %s151, %s152
        %s154 = smul.addr %s153, 4
        %s155 = scalar_lea.vmem %s0, %s154
        %s156 = smul.u32 256, %s17
      $region28: #{qa_head_pallas.1} parent=23 // pred_fallthru
        _
    $region24: #{qa_head_pallas.1} parent=5 // pred_fallthru
      _
    %p157 = scmp.le.s32.totalorder 1, %s9
    %p158 = scmp.lt.s32.totalorder %s9, 5
    %p159 = pnand %p157, %p158
    %p160 = pneg %p159
    // Predicated region
    $region29: #{qa_head_pallas.1} parent=5 // pred_check
      _
    $region30: #{qa_head_pallas.1} parent=5 // pred_check_branch
      %162 = sbr.rel (%p159) target = $region32
    $region31: #{qa_head_pallas.1} parent=5 // pred_region
      %s163 = ssub.s32 %s9, 1
      %s164 = smul.u32 256, %s19
      %p165 = scmp.lt.s32.totalorder %s18, 1
      %s166 = scalar_select %p165, %s18, 1
      %p167 = scmp.lt.s32.totalorder %s164, 511
      %s168 = scalar_select %p167, %s164, 511
      %s169 = smul.addr %s166, 512
      %s170 = sadd.s32 %s168, %s169
      %s171 = smul.addr %s170, 4
      %s172 = scalar_lea.vmem %s0, %s171
      %p173 = pneg %p49
      %p174 = pneg %p46
      %p175 = pneg %p70
      %p176 = pneg %p67
      %p177 = pneg %p91
      %p178 = pneg %p88
      %p179 = pneg %p119
      %p180 = pneg %p116
      %s181 = smul.u32 16, %s19
      %p182 = scmp.lt.s32.totalorder %s18, 1
      %s183 = scalar_select %p182, %s18, 1
      %p184 = scmp.lt.s32.totalorder %s181, 31
      %s185 = scalar_select %p184, %s181, 31
      %s186 = smul.addr %s183, 32
      %s187 = sadd.s32 %s185, %s186
      %s188 = scalar_lea.vmem %s3, %s187
      %s189 = smul.u32 256, %s19
      %p190 = scmp.lt.s32.totalorder %s18, 1
      %s191 = scalar_select %p190, %s18, 1
      %p192 = scmp.lt.s32.totalorder %s189, 511
      %s193 = scalar_select %p192, %s189, 511
      %s194 = smul.addr %s191, 512
      %s195 = sadd.s32 %s193, %s194
      %s196 = smul.addr %s195, 4
      %s197 = scalar_lea.vmem %s0, %s196
      %s198 = smul.u32 256, %s19
      %s199 = smul.u32 16, %s19
      %p200 = scmp.lt.s32.totalorder %s18, 1
      %s201 = scalar_select %p200, %s18, 1
      %p202 = scmp.lt.s32.totalorder %s199, 31
      %s203 = scalar_select %p202, %s199, 31
      %s204 = smul.addr %s201, 32
      %s205 = sadd.s32 %s203, %s204
      %s206 = scalar_lea.vmem %s3, %s205
      %s207 = smul.u32 16, %s19
      %v209 = vld [vmem:[%s197] sm:$0xf]
      %v210 = vld [vmem:[%s197 + $0x4] sm:$0xf]
      %v211 = vld [vmem:[%s197 + $0x8] sm:$0xf]
      %v212 = vld [vmem:[%s197 + $0xc] sm:$0xf]
      %v213 = vld [vmem:[%s197 + $0x10] sm:$0xf]
      %v214 = vld [vmem:[%s197 + $0x14] sm:$0xf]
      %v215 = vld [vmem:[%s197 + $0x18] sm:$0xf]
      %v216 = vld [vmem:[%s197 + $0x1c] sm:$0xf]
      %v217 = vld [vmem:[%s197 + $0x20] sm:$0xf]
      %v218 = vld [vmem:[%s197 + $0x24] sm:$0xf]
      %v219 = vld [vmem:[%s197 + $0x28] sm:$0xf]
      %v220 = vld [vmem:[%s197 + $0x2c] sm:$0xf]
      %v221 = vld [vmem:[%s197 + $0x30] sm:$0xf]
      %v222 = vld [vmem:[%s197 + $0x34] sm:$0xf]
      %v223 = vld [vmem:[%s197 + $0x38] sm:$0xf]
      %v224 = vld [vmem:[%s197 + $0x3c] sm:$0xf]
      %v225 = vld [vmem:[%s197 + $0x40] sm:$0xf]
      %v226 = vld [vmem:[%s197 + $0x44] sm:$0xf]
      %v227 = vld [vmem:[%s197 + $0x48] sm:$0xf]
      %v228 = vld [vmem:[%s197 + $0x4c] sm:$0xf]
      %v229 = vld [vmem:[%s197 + $0x50] sm:$0xf]
      %v230 = vld [vmem:[%s197 + $0x54] sm:$0xf]
      %v231 = vld [vmem:[%s197 + $0x58] sm:$0xf]
      %v232 = vld [vmem:[%s197 + $0x5c] sm:$0xf]
      %v233 = vld [vmem:[%s197 + $0x60] sm:$0xf]
      %v234 = vld [vmem:[%s197 + $0x64] sm:$0xf]
      %v235 = vld [vmem:[%s197 + $0x68] sm:$0xf]
      %v236 = vld [vmem:[%s197 + $0x6c] sm:$0xf]
      %v237 = vld [vmem:[%s197 + $0x70] sm:$0xf]
      %v238 = vld [vmem:[%s197 + $0x74] sm:$0xf]
      %v239 = vld [vmem:[%s197 + $0x78] sm:$0xf]
      %v240 = vld [vmem:[%s197 + $0x7c] sm:$0xf]
      %v241 = vld [vmem:[%s197 + $0x80] sm:$0xf]
      %v242 = vld [vmem:[%s197 + $0x84] sm:$0xf]
      %v243 = vld [vmem:[%s197 + $0x88] sm:$0xf]
      %v244 = vld [vmem:[%s197 + $0x8c] sm:$0xf]
      %v245 = vld [vmem:[%s197 + $0x90] sm:$0xf]
      %v246 = vld [vmem:[%s197 + $0x94] sm:$0xf]
      %v247 = vld [vmem:[%s197 + $0x98] sm:$0xf]
      %v248 = vld [vmem:[%s197 + $0x9c] sm:$0xf]
      %v249 = vld [vmem:[%s197 + $0xa0] sm:$0xf]
      %v250 = vld [vmem:[%s197 + $0xa4] sm:$0xf]
      %v251 = vld [vmem:[%s197 + $0xa8] sm:$0xf]
      %v252 = vld [vmem:[%s197 + $0xac] sm:$0xf]
      %v253 = vld [vmem:[%s197 + $0xb0] sm:$0xf]
      %v254 = vld [vmem:[%s197 + $0xb4] sm:$0xf]
      %v255 = vld [vmem:[%s197 + $0xb8] sm:$0xf]
      %v256 = vld [vmem:[%s197 + $0xbc] sm:$0xf]
      %v257 = vld [vmem:[%s197 + $0xc0] sm:$0xf]
      %v258 = vld [vmem:[%s197 + $0xc4] sm:$0xf]
      %v259 = vld [vmem:[%s197 + $0xc8] sm:$0xf]
      %v260 = vld [vmem:[%s197 + $0xcc] sm:$0xf]
      %v261 = vld [vmem:[%s197 + $0xd0] sm:$0xf]
      %v262 = vld [vmem:[%s197 + $0xd4] sm:$0xf]
      %v263 = vld [vmem:[%s197 + $0xd8] sm:$0xf]
      %v264 = vld [vmem:[%s197 + $0xdc] sm:$0xf]
      %v265 = vld [vmem:[%s197 + $0xe0] sm:$0xf]
      %v266 = vld [vmem:[%s197 + $0xe4] sm:$0xf]
      %v267 = vld [vmem:[%s197 + $0xe8] sm:$0xf]
      %v268 = vld [vmem:[%s197 + $0xec] sm:$0xf]
      %v269 = vld [vmem:[%s197 + $0xf0] sm:$0xf]
      %v270 = vld [vmem:[%s197 + $0xf4] sm:$0xf]
      %v271 = vld [vmem:[%s197 + $0xf8] sm:$0xf]
      %v272 = vld [vmem:[%s197 + $0xfc] sm:$0xf]
      %v273 = vld [vmem:[%s197 + $0x100] sm:$0xf]
      %v274 = vld [vmem:[%s197 + $0x104] sm:$0xf]
      %v275 = vld [vmem:[%s197 + $0x108] sm:$0xf]
      %v276 = vld [vmem:[%s197 + $0x10c] sm:$0xf]
      %v277 = vld [vmem:[%s197 + $0x110] sm:$0xf]
      %v278 = vld [vmem:[%s197 + $0x114] sm:$0xf]
      %v279 = vld [vmem:[%s197 + $0x118] sm:$0xf]
      %v280 = vld [vmem:[%s197 + $0x11c] sm:$0xf]
      %v281 = vld [vmem:[%s197 + $0x120] sm:$0xf]
      %v282 = vld [vmem:[%s197 + $0x124] sm:$0xf]
      %v283 = vld [vmem:[%s197 + $0x128] sm:$0xf]
      %v284 = vld [vmem:[%s197 + $0x12c] sm:$0xf]
      %v285 = vld [vmem:[%s197 + $0x130] sm:$0xf]
      %v286 = vld [vmem:[%s197 + $0x134] sm:$0xf]
      %v287 = vld [vmem:[%s197 + $0x138] sm:$0xf]
      %v288 = vld [vmem:[%s197 + $0x13c] sm:$0xf]
      %v289 = vld [vmem:[%s197 + $0x140] sm:$0xf]
      %v290 = vld [vmem:[%s197 + $0x144] sm:$0xf]
      %v291 = vld [vmem:[%s197 + $0x148] sm:$0xf]
      %v292 = vld [vmem:[%s197 + $0x14c] sm:$0xf]
      %v293 = vld [vmem:[%s197 + $0x150] sm:$0xf]
      %v294 = vld [vmem:[%s197 + $0x154] sm:$0xf]
      %v295 = vld [vmem:[%s197 + $0x158] sm:$0xf]
      %v296 = vld [vmem:[%s197 + $0x15c] sm:$0xf]
      %v297 = vld [vmem:[%s197 + $0x160] sm:$0xf]
      %v298 = vld [vmem:[%s197 + $0x164] sm:$0xf]
      %v299 = vld [vmem:[%s197 + $0x168] sm:$0xf]
      %v300 = vld [vmem:[%s197 + $0x16c] sm:$0xf]
      %v301 = vld [vmem:[%s197 + $0x170] sm:$0xf]
      %v302 = vld [vmem:[%s197 + $0x174] sm:$0xf]
      %v303 = vld [vmem:[%s197 + $0x178] sm:$0xf]
      %v304 = vld [vmem:[%s197 + $0x17c] sm:$0xf]
      %v305 = vld [vmem:[%s197 + $0x180] sm:$0xf]
      %v306 = vld [vmem:[%s197 + $0x184] sm:$0xf]
      %v307 = vld [vmem:[%s197 + $0x188] sm:$0xf]
      %v308 = vld [vmem:[%s197 + $0x18c] sm:$0xf]
      %v309 = vld [vmem:[%s197 + $0x190] sm:$0xf]
      %v310 = vld [vmem:[%s197 + $0x194] sm:$0xf]
      %v311 = vld [vmem:[%s197 + $0x198] sm:$0xf]
      %v312 = vld [vmem:[%s197 + $0x19c] sm:$0xf]
      %v313 = vld [vmem:[%s197 + $0x1a0] sm:$0xf]
      %v314 = vld [vmem:[%s197 + $0x1a4] sm:$0xf]
      %v315 = vld [vmem:[%s197 + $0x1a8] sm:$0xf]
      %v316 = vld [vmem:[%s197 + $0x1ac] sm:$0xf]
      %v317 = vld [vmem:[%s197 + $0x1b0] sm:$0xf]
      %v318 = vld [vmem:[%s197 + $0x1b4] sm:$0xf]
      %v319 = vld [vmem:[%s197 + $0x1b8] sm:$0xf]
      %v320 = vld [vmem:[%s197 + $0x1bc] sm:$0xf]
      %v321 = vld [vmem:[%s197 + $0x1c0] sm:$0xf]
      %v322 = vld [vmem:[%s197 + $0x1c4] sm:$0xf]
      %v323 = vld [vmem:[%s197 + $0x1c8] sm:$0xf]
      %v324 = vld [vmem:[%s197 + $0x1cc] sm:$0xf]
      %v325 = vld [vmem:[%s197 + $0x1d0] sm:$0xf]
      %v326 = vld [vmem:[%s197 + $0x1d4] sm:$0xf]
      %v327 = vld [vmem:[%s197 + $0x1d8] sm:$0xf]
      %v328 = vld [vmem:[%s197 + $0x1dc] sm:$0xf]
      %v329 = vld [vmem:[%s197 + $0x1e0] sm:$0xf]
      %v330 = vld [vmem:[%s197 + $0x1e4] sm:$0xf]
      %v331 = vld [vmem:[%s197 + $0x1e8] sm:$0xf]
      %v332 = vld [vmem:[%s197 + $0x1ec] sm:$0xf]
      %v333 = vld [vmem:[%s197 + $0x1f0] sm:$0xf]
      %v334 = vld [vmem:[%s197 + $0x1f4] sm:$0xf]
      %v335 = vld [vmem:[%s197 + $0x1f8] sm:$0xf]
      %v336 = vld [vmem:[%s197 + $0x1fc] sm:$0xf]
      %v337 = vld [vmem:[%s197 + $0x200] sm:$0xf]
      %v338 = vld [vmem:[%s197 + $0x204] sm:$0xf]
      %v339 = vld [vmem:[%s197 + $0x208] sm:$0xf]
      %v340 = vld [vmem:[%s197 + $0x20c] sm:$0xf]
      %v341 = vld [vmem:[%s197 + $0x210] sm:$0xf]
      %v342 = vld [vmem:[%s197 + $0x214] sm:$0xf]
      %v343 = vld [vmem:[%s197 + $0x218] sm:$0xf]
      %v344 = vld [vmem:[%s197 + $0x21c] sm:$0xf]
      %v345 = vld [vmem:[%s197 + $0x220] sm:$0xf]
      %v346 = vld [vmem:[%s197 + $0x224] sm:$0xf]
      %v347 = vld [vmem:[%s197 + $0x228] sm:$0xf]
      %v348 = vld [vmem:[%s197 + $0x22c] sm:$0xf]
      %v349 = vld [vmem:[%s197 + $0x230] sm:$0xf]
      %v350 = vld [vmem:[%s197 + $0x234] sm:$0xf]
      %v351 = vld [vmem:[%s197 + $0x238] sm:$0xf]
      %v352 = vld [vmem:[%s197 + $0x23c] sm:$0xf]
      %v353 = vld [vmem:[%s197 + $0x240] sm:$0xf]
      %v354 = vld [vmem:[%s197 + $0x244] sm:$0xf]
      %v355 = vld [vmem:[%s197 + $0x248] sm:$0xf]
      %v356 = vld [vmem:[%s197 + $0x24c] sm:$0xf]
      %v357 = vld [vmem:[%s197 + $0x250] sm:$0xf]
      %v358 = vld [vmem:[%s197 + $0x254] sm:$0xf]
      %v359 = vld [vmem:[%s197 + $0x258] sm:$0xf]
      %v360 = vld [vmem:[%s197 + $0x25c] sm:$0xf]
      %v361 = vld [vmem:[%s197 + $0x260] sm:$0xf]
      %v362 = vld [vmem:[%s197 + $0x264] sm:$0xf]
      %v363 = vld [vmem:[%s197 + $0x268] sm:$0xf]
      %v364 = vld [vmem:[%s197 + $0x26c] sm:$0xf]
      %v365 = vld [vmem:[%s197 + $0x270] sm:$0xf]
      %v366 = vld [vmem:[%s197 + $0x274] sm:$0xf]
      %v367 = vld [vmem:[%s197 + $0x278] sm:$0xf]
      %v368 = vld [vmem:[%s197 + $0x27c] sm:$0xf]
      %v369 = vld [vmem:[%s197 + $0x280] sm:$0xf]
      %v370 = vld [vmem:[%s197 + $0x284] sm:$0xf]
      %v371 = vld [vmem:[%s197 + $0x288] sm:$0xf]
      %v372 = vld [vmem:[%s197 + $0x28c] sm:$0xf]
      %v373 = vld [vmem:[%s197 + $0x290] sm:$0xf]
      %v374 = vld [vmem:[%s197 + $0x294] sm:$0xf]
      %v375 = vld [vmem:[%s197 + $0x298] sm:$0xf]
      %v376 = vld [vmem:[%s197 + $0x29c] sm:$0xf]
      %v377 = vld [vmem:[%s197 + $0x2a0] sm:$0xf]
      %v378 = vld [vmem:[%s197 + $0x2a4] sm:$0xf]
      %v379 = vld [vmem:[%s197 + $0x2a8] sm:$0xf]
      %v380 = vld [vmem:[%s197 + $0x2ac] sm:$0xf]
      %v381 = vld [vmem:[%s197 + $0x2b0] sm:$0xf]
      %v382 = vld [vmem:[%s197 + $0x2b4] sm:$0xf]
      %v383 = vld [vmem:[%s197 + $0x2b8] sm:$0xf]
      %v384 = vld [vmem:[%s197 + $0x2bc] sm:$0xf]
      %v385 = vld [vmem:[%s197 + $0x2c0] sm:$0xf]
      %v386 = vld [vmem:[%s197 + $0x2c4] sm:$0xf]
      %v387 = vld [vmem:[%s197 + $0x2c8] sm:$0xf]
      %v388 = vld [vmem:[%s197 + $0x2cc] sm:$0xf]
      %v389 = vld [vmem:[%s197 + $0x2d0] sm:$0xf]
      %v390 = vld [vmem:[%s197 + $0x2d4] sm:$0xf]
      %v391 = vld [vmem:[%s197 + $0x2d8] sm:$0xf]
      %v392 = vld [vmem:[%s197 + $0x2dc] sm:$0xf]
      %v393 = vld [vmem:[%s197 + $0x2e0] sm:$0xf]
      %v394 = vld [vmem:[%s197 + $0x2e4] sm:$0xf]
      %v395 = vld [vmem:[%s197 + $0x2e8] sm:$0xf]
      %v396 = vld [vmem:[%s197 + $0x2ec] sm:$0xf]
      %v397 = vld [vmem:[%s197 + $0x2f0] sm:$0xf]
      %v398 = vld [vmem:[%s197 + $0x2f4] sm:$0xf]
      %v399 = vld [vmem:[%s197 + $0x2f8] sm:$0xf]
      %v400 = vld [vmem:[%s197 + $0x2fc] sm:$0xf]
      %v401 = vld [vmem:[%s197 + $0x300] sm:$0xf]
      %v402 = vld [vmem:[%s197 + $0x304] sm:$0xf]
      %v403 = vld [vmem:[%s197 + $0x308] sm:$0xf]
      %v404 = vld [vmem:[%s197 + $0x30c] sm:$0xf]
      %v405 = vld [vmem:[%s197 + $0x310] sm:$0xf]
      %v406 = vld [vmem:[%s197 + $0x314] sm:$0xf]
      %v407 = vld [vmem:[%s197 + $0x318] sm:$0xf]
      %v408 = vld [vmem:[%s197 + $0x31c] sm:$0xf]
      %v409 = vld [vmem:[%s197 + $0x320] sm:$0xf]
      %v410 = vld [vmem:[%s197 + $0x324] sm:$0xf]
      %v411 = vld [vmem:[%s197 + $0x328] sm:$0xf]
      %v412 = vld [vmem:[%s197 + $0x32c] sm:$0xf]
      %v413 = vld [vmem:[%s197 + $0x330] sm:$0xf]
      %v414 = vld [vmem:[%s197 + $0x334] sm:$0xf]
      %v415 = vld [vmem:[%s197 + $0x338] sm:$0xf]
      %v416 = vld [vmem:[%s197 + $0x33c] sm:$0xf]
      %v417 = vld [vmem:[%s197 + $0x340] sm:$0xf]
      %v418 = vld [vmem:[%s197 + $0x344] sm:$0xf]
      %v419 = vld [vmem:[%s197 + $0x348] sm:$0xf]
      %v420 = vld [vmem:[%s197 + $0x34c] sm:$0xf]
      %v421 = vld [vmem:[%s197 + $0x350] sm:$0xf]
      %v422 = vld [vmem:[%s197 + $0x354] sm:$0xf]
      %v423 = vld [vmem:[%s197 + $0x358] sm:$0xf]
      %v424 = vld [vmem:[%s197 + $0x35c] sm:$0xf]
      %v425 = vld [vmem:[%s197 + $0x360] sm:$0xf]
      %v426 = vld [vmem:[%s197 + $0x364] sm:$0xf]
      %v427 = vld [vmem:[%s197 + $0x368] sm:$0xf]
      %v428 = vld [vmem:[%s197 + $0x36c] sm:$0xf]
      %v429 = vld [vmem:[%s197 + $0x370] sm:$0xf]
      %v430 = vld [vmem:[%s197 + $0x374] sm:$0xf]
      %v431 = vld [vmem:[%s197 + $0x378] sm:$0xf]
      %v432 = vld [vmem:[%s197 + $0x37c] sm:$0xf]
      %v433 = vld [vmem:[%s197 + $0x380] sm:$0xf]
      %v434 = vld [vmem:[%s197 + $0x384] sm:$0xf]
      %v435 = vld [vmem:[%s197 + $0x388] sm:$0xf]
      %v436 = vld [vmem:[%s197 + $0x38c] sm:$0xf]
      %v437 = vld [vmem:[%s197 + $0x390] sm:$0xf]
      %v438 = vld [vmem:[%s197 + $0x394] sm:$0xf]
      %v439 = vld [vmem:[%s197 + $0x398] sm:$0xf]
      %v440 = vld [vmem:[%s197 + $0x39c] sm:$0xf]
      %v441 = vld [vmem:[%s197 + $0x3a0] sm:$0xf]
      %v442 = vld [vmem:[%s197 + $0x3a4] sm:$0xf]
      %v443 = vld [vmem:[%s197 + $0x3a8] sm:$0xf]
      %v444 = vld [vmem:[%s197 + $0x3ac] sm:$0xf]
      %v445 = vld [vmem:[%s197 + $0x3b0] sm:$0xf]
      %v446 = vld [vmem:[%s197 + $0x3b4] sm:$0xf]
      %v447 = vld [vmem:[%s197 + $0x3b8] sm:$0xf]
      %v448 = vld [vmem:[%s197 + $0x3bc] sm:$0xf]
      %v449 = vld [vmem:[%s197 + $0x3c0] sm:$0xf]
      %v450 = vld [vmem:[%s197 + $0x3c4] sm:$0xf]
      %v451 = vld [vmem:[%s197 + $0x3c8] sm:$0xf]
      %v452 = vld [vmem:[%s197 + $0x3cc] sm:$0xf]
      %v453 = vld [vmem:[%s197 + $0x3d0] sm:$0xf]
      %v454 = vld [vmem:[%s197 + $0x3d4] sm:$0xf]
      %v455 = vld [vmem:[%s197 + $0x3d8] sm:$0xf]
      %v456 = vld [vmem:[%s197 + $0x3dc] sm:$0xf]
      %v457 = vld [vmem:[%s197 + $0x3e0] sm:$0xf]
      %v458 = vld [vmem:[%s197 + $0x3e4] sm:$0xf]
      %v459 = vld [vmem:[%s197 + $0x3e8] sm:$0xf]
      %v460 = vld [vmem:[%s197 + $0x3ec] sm:$0xf]
      %v461 = vld [vmem:[%s197 + $0x3f0] sm:$0xf]
      %v462 = vld [vmem:[%s197 + $0x3f4] sm:$0xf]
      %v463 = vld [vmem:[%s197 + $0x3f8] sm:$0xf]
      %v464 = vld [vmem:[%s197 + $0x3fc] sm:$0xf]
      %v465 = vld [vmem:[%s1] sm:$0x1]
      %v466 = vld [vmem:[%s2] sm:$0x3]
      %468 = vset.pattern.permute.xlu0 0
      %469 = vperm.xlu0 %468, %v466
      %v470 = vpop.permute.xlu0 %469
      %v728 = vunpack.c.l.b16 %v209
      %v729 = vunpack.c.l.b16 %v210
      %v730 = vunpack.c.l.b16 %v211
      %v731 = vunpack.c.l.b16 %v212
      %v732 = vunpack.c.l.b16 %v213
      %v733 = vunpack.c.l.b16 %v214
      %v734 = vunpack.c.l.b16 %v215
      %v735 = vunpack.c.l.b16 %v216
      %v736 = vunpack.c.l.b16 %v217
      %v737 = vunpack.c.l.b16 %v218
      %v738 = vunpack.c.l.b16 %v219
      %v739 = vunpack.c.l.b16 %v220
      %v740 = vunpack.c.l.b16 %v221
      %v741 = vunpack.c.l.b16 %v222
      %v742 = vunpack.c.l.b16 %v223
      %v743 = vunpack.c.l.b16 %v224
      %v744 = vunpack.c.l.b16 %v225
      %v745 = vunpack.c.l.b16 %v226
      %v746 = vunpack.c.l.b16 %v227
      %v747 = vunpack.c.l.b16 %v228
      %v748 = vunpack.c.l.b16 %v229
      %v749 = vunpack.c.l.b16 %v230
      %v750 = vunpack.c.l.b16 %v231
      %v751 = vunpack.c.l.b16 %v232
      %v752 = vunpack.c.l.b16 %v233
      %v753 = vunpack.c.l.b16 %v234
      %v754 = vunpack.c.l.b16 %v235
      %v755 = vunpack.c.l.b16 %v236
      %v756 = vunpack.c.l.b16 %v237
      %v757 = vunpack.c.l.b16 %v238
      %v758 = vunpack.c.l.b16 %v239
      %v759 = vunpack.c.l.b16 %v240
      %v760 = vunpack.c.l.b16 %v241
      %v761 = vunpack.c.l.b16 %v242
      %v762 = vunpack.c.l.b16 %v243
      %v763 = vunpack.c.l.b16 %v244
      %v764 = vunpack.c.l.b16 %v245
      %v765 = vunpack.c.l.b16 %v246
      %v766 = vunpack.c.l.b16 %v247
      %v767 = vunpack.c.l.b16 %v248
      %v768 = vunpack.c.l.b16 %v249
      %v769 = vunpack.c.l.b16 %v250
      %v770 = vunpack.c.l.b16 %v251
      %v771 = vunpack.c.l.b16 %v252
      %v772 = vunpack.c.l.b16 %v253
      %v773 = vunpack.c.l.b16 %v254
      %v774 = vunpack.c.l.b16 %v255
      %v775 = vunpack.c.l.b16 %v256
      %v776 = vunpack.c.l.b16 %v257
      %v777 = vunpack.c.l.b16 %v258
      %v778 = vunpack.c.l.b16 %v259
      %v779 = vunpack.c.l.b16 %v260
      %v780 = vunpack.c.l.b16 %v261
      %v781 = vunpack.c.l.b16 %v262
      %v782 = vunpack.c.l.b16 %v263
      %v783 = vunpack.c.l.b16 %v264
      %v784 = vunpack.c.l.b16 %v265
      %v785 = vunpack.c.l.b16 %v266
      %v786 = vunpack.c.l.b16 %v267
      %v787 = vunpack.c.l.b16 %v268
      %v788 = vunpack.c.l.b16 %v269
      %v789 = vunpack.c.l.b16 %v270
      %v790 = vunpack.c.l.b16 %v271
      %v791 = vunpack.c.l.b16 %v272
      %v792 = vunpack.c.l.b16 %v273
      %v793 = vunpack.c.l.b16 %v274
      %v794 = vunpack.c.l.b16 %v275
      %v795 = vunpack.c.l.b16 %v276
      %v796 = vunpack.c.l.b16 %v277
      %v797 = vunpack.c.l.b16 %v278
      %v798 = vunpack.c.l.b16 %v279
      %v799 = vunpack.c.l.b16 %v280
      %v800 = vunpack.c.l.b16 %v281
      %v801 = vunpack.c.l.b16 %v282
      %v802 = vunpack.c.l.b16 %v283
      %v803 = vunpack.c.l.b16 %v284
      %v804 = vunpack.c.l.b16 %v285
      %v805 = vunpack.c.l.b16 %v286
      %v806 = vunpack.c.l.b16 %v287
      %v807 = vunpack.c.l.b16 %v288
      %v808 = vunpack.c.l.b16 %v289
      %v809 = vunpack.c.l.b16 %v290
      %v810 = vunpack.c.l.b16 %v291
      %v811 = vunpack.c.l.b16 %v292
      %v812 = vunpack.c.l.b16 %v293
      %v813 = vunpack.c.l.b16 %v294
      %v814 = vunpack.c.l.b16 %v295
      %v815 = vunpack.c.l.b16 %v296
      %v816 = vunpack.c.l.b16 %v297
      %v817 = vunpack.c.l.b16 %v298
      %v818 = vunpack.c.l.b16 %v299
      %v819 = vunpack.c.l.b16 %v300
      %v820 = vunpack.c.l.b16 %v301
      %v821 = vunpack.c.l.b16 %v302
      %v822 = vunpack.c.l.b16 %v303
      %v823 = vunpack.c.l.b16 %v304
      %v824 = vunpack.c.l.b16 %v305
      %v825 = vunpack.c.l.b16 %v306
      %v826 = vunpack.c.l.b16 %v307
      %v827 = vunpack.c.l.b16 %v308
      %v828 = vunpack.c.l.b16 %v309
      %v829 = vunpack.c.l.b16 %v310
      %v830 = vunpack.c.l.b16 %v311
      %v831 = vunpack.c.l.b16 %v312
      %v832 = vunpack.c.l.b16 %v313
      %v833 = vunpack.c.l.b16 %v314
      %v834 = vunpack.c.l.b16 %v315
      %v835 = vunpack.c.l.b16 %v316
      %v836 = vunpack.c.l.b16 %v317
      %v837 = vunpack.c.l.b16 %v318
      %v838 = vunpack.c.l.b16 %v319
      %v839 = vunpack.c.l.b16 %v320
      %v840 = vunpack.c.l.b16 %v321
      %v841 = vunpack.c.l.b16 %v322
      %v842 = vunpack.c.l.b16 %v323
      %v843 = vunpack.c.l.b16 %v324
      %v844 = vunpack.c.l.b16 %v325
      %v845 = vunpack.c.l.b16 %v326
      %v846 = vunpack.c.l.b16 %v327
      %v847 = vunpack.c.l.b16 %v328
      %v848 = vunpack.c.l.b16 %v329
      %v849 = vunpack.c.l.b16 %v330
      %v850 = vunpack.c.l.b16 %v331
      %v851 = vunpack.c.l.b16 %v332
      %v852 = vunpack.c.l.b16 %v333
      %v853 = vunpack.c.l.b16 %v334
      %v854 = vunpack.c.l.b16 %v335
      %v855 = vunpack.c.l.b16 %v336
      %v856 = vunpack.c.l.b16 %v337
      %v857 = vunpack.c.l.b16 %v338
      %v858 = vunpack.c.l.b16 %v339
      %v859 = vunpack.c.l.b16 %v340
      %v860 = vunpack.c.l.b16 %v341
      %v861 = vunpack.c.l.b16 %v342
      %v862 = vunpack.c.l.b16 %v343
      %v863 = vunpack.c.l.b16 %v344
      %v864 = vunpack.c.l.b16 %v345
      %v865 = vunpack.c.l.b16 %v346
      %v866 = vunpack.c.l.b16 %v347
      %v867 = vunpack.c.l.b16 %v348
      %v868 = vunpack.c.l.b16 %v349
      %v869 = vunpack.c.l.b16 %v350
      %v870 = vunpack.c.l.b16 %v351
      %v871 = vunpack.c.l.b16 %v352
      %v872 = vunpack.c.l.b16 %v353
      %v873 = vunpack.c.l.b16 %v354
      %v874 = vunpack.c.l.b16 %v355
      %v875 = vunpack.c.l.b16 %v356
      %v876 = vunpack.c.l.b16 %v357
      %v877 = vunpack.c.l.b16 %v358
      %v878 = vunpack.c.l.b16 %v359
      %v879 = vunpack.c.l.b16 %v360
      %v880 = vunpack.c.l.b16 %v361
      %v881 = vunpack.c.l.b16 %v362
      %v882 = vunpack.c.l.b16 %v363
      %v883 = vunpack.c.l.b16 %v364
      %v884 = vunpack.c.l.b16 %v365
      %v885 = vunpack.c.l.b16 %v366
      %v886 = vunpack.c.l.b16 %v367
      %v887 = vunpack.c.l.b16 %v368
      %v888 = vunpack.c.l.b16 %v369
      %v889 = vunpack.c.l.b16 %v370
      %v890 = vunpack.c.l.b16 %v371
      %v891 = vunpack.c.l.b16 %v372
      %v892 = vunpack.c.l.b16 %v373
      %v893 = vunpack.c.l.b16 %v374
      %v894 = vunpack.c.l.b16 %v375
      %v895 = vunpack.c.l.b16 %v376
      %v896 = vunpack.c.l.b16 %v377
      %v897 = vunpack.c.l.b16 %v378
      %v898 = vunpack.c.l.b16 %v379
      %v899 = vunpack.c.l.b16 %v380
      %v900 = vunpack.c.l.b16 %v381
      %v901 = vunpack.c.l.b16 %v382
      %v902 = vunpack.c.l.b16 %v383
      %v903 = vunpack.c.l.b16 %v384
      %v904 = vunpack.c.l.b16 %v385
      %v905 = vunpack.c.l.b16 %v386
      %v906 = vunpack.c.l.b16 %v387
      %v907 = vunpack.c.l.b16 %v388
      %v908 = vunpack.c.l.b16 %v389
      %v909 = vunpack.c.l.b16 %v390
      %v910 = vunpack.c.l.b16 %v391
      %v911 = vunpack.c.l.b16 %v392
      %v912 = vunpack.c.l.b16 %v393
      %v913 = vunpack.c.l.b16 %v394
      %v914 = vunpack.c.l.b16 %v395
      %v915 = vunpack.c.l.b16 %v396
      %v916 = vunpack.c.l.b16 %v397
      %v917 = vunpack.c.l.b16 %v398
      %v918 = vunpack.c.l.b16 %v399
      %v919 = vunpack.c.l.b16 %v400
      %v920 = vunpack.c.l.b16 %v401
      %v921 = vunpack.c.l.b16 %v402
      %v922 = vunpack.c.l.b16 %v403
      %v923 = vunpack.c.l.b16 %v404
      %v924 = vunpack.c.l.b16 %v405
      %v925 = vunpack.c.l.b16 %v406
      %v926 = vunpack.c.l.b16 %v407
      %v927 = vunpack.c.l.b16 %v408
      %v928 = vunpack.c.l.b16 %v409
      %v929 = vunpack.c.l.b16 %v410
      %v930 = vunpack.c.l.b16 %v411
      %v931 = vunpack.c.l.b16 %v412
      %v932 = vunpack.c.l.b16 %v413
      %v933 = vunpack.c.l.b16 %v414
      %v934 = vunpack.c.l.b16 %v415
      %v935 = vunpack.c.l.b16 %v416
      %v936 = vunpack.c.l.b16 %v417
      %v937 = vunpack.c.l.b16 %v418
      %v938 = vunpack.c.l.b16 %v419
      %v939 = vunpack.c.l.b16 %v420
      %v940 = vunpack.c.l.b16 %v421
      %v941 = vunpack.c.l.b16 %v422
      %v942 = vunpack.c.l.b16 %v423
      %v943 = vunpack.c.l.b16 %v424
      %v944 = vunpack.c.l.b16 %v425
      %v945 = vunpack.c.l.b16 %v426
      %v946 = vunpack.c.l.b16 %v427
      %v947 = vunpack.c.l.b16 %v428
      %v948 = vunpack.c.l.b16 %v429
      %v949 = vunpack.c.l.b16 %v430
      %v950 = vunpack.c.l.b16 %v431
      %v951 = vunpack.c.l.b16 %v432
      %v952 = vunpack.c.l.b16 %v433
      %v953 = vunpack.c.l.b16 %v434
      %v954 = vunpack.c.l.b16 %v435
      %v955 = vunpack.c.l.b16 %v436
      %v956 = vunpack.c.l.b16 %v437
      %v957 = vunpack.c.l.b16 %v438
      %v958 = vunpack.c.l.b16 %v439
      %v959 = vunpack.c.l.b16 %v440
      %v960 = vunpack.c.l.b16 %v441
      %v961 = vunpack.c.l.b16 %v442
      %v962 = vunpack.c.l.b16 %v443
      %v963 = vunpack.c.l.b16 %v444
      %v964 = vunpack.c.l.b16 %v445
      %v965 = vunpack.c.l.b16 %v446
      %v966 = vunpack.c.l.b16 %v447
      %v967 = vunpack.c.l.b16 %v448
      %v968 = vunpack.c.l.b16 %v449
      %v969 = vunpack.c.l.b16 %v450
      %v970 = vunpack.c.l.b16 %v451
      %v971 = vunpack.c.l.b16 %v452
      %v972 = vunpack.c.l.b16 %v453
      %v973 = vunpack.c.l.b16 %v454
      %v974 = vunpack.c.l.b16 %v455
      %v975 = vunpack.c.l.b16 %v456
      %v976 = vunpack.c.l.b16 %v457
      %v977 = vunpack.c.l.b16 %v458
      %v978 = vunpack.c.l.b16 %v459
      %v979 = vunpack.c.l.b16 %v460
      %v980 = vunpack.c.l.b16 %v461
      %v981 = vunpack.c.l.b16 %v462
      %v982 = vunpack.c.l.b16 %v463
      %v983 = vunpack.c.l.b16 %v464
      %v984 = vpack.c.b16 %v729, %v728
      %v985 = vpack.c.b16 %v731, %v730
      %v986 = vpack.c.b16 %v733, %v732
      %v987 = vpack.c.b16 %v735, %v734
      %v988 = vpack.c.b16 %v737, %v736
      %v989 = vpack.c.b16 %v739, %v738
      %v990 = vpack.c.b16 %v741, %v740
      %v991 = vpack.c.b16 %v743, %v742
      %v992 = vpack.c.b16 %v745, %v744
      %v993 = vpack.c.b16 %v747, %v746
      %v994 = vpack.c.b16 %v749, %v748
      %v995 = vpack.c.b16 %v751, %v750
      %v996 = vpack.c.b16 %v753, %v752
      %v997 = vpack.c.b16 %v755, %v754
      %v998 = vpack.c.b16 %v757, %v756
      %v999 = vpack.c.b16 %v759, %v758
      %v1000 = vpack.c.b16 %v761, %v760
      %v1001 = vpack.c.b16 %v763, %v762
      %v1002 = vpack.c.b16 %v765, %v764
      %v1003 = vpack.c.b16 %v767, %v766
      %v1004 = vpack.c.b16 %v769, %v768
      %v1005 = vpack.c.b16 %v771, %v770
      %v1006 = vpack.c.b16 %v773, %v772
      %v1007 = vpack.c.b16 %v775, %v774
      %v1008 = vpack.c.b16 %v777, %v776
      %v1009 = vpack.c.b16 %v779, %v778
      %v1010 = vpack.c.b16 %v781, %v780
      %v1011 = vpack.c.b16 %v783, %v782
      %v1012 = vpack.c.b16 %v785, %v784
      %v1013 = vpack.c.b16 %v787, %v786
      %v1014 = vpack.c.b16 %v789, %v788
      %v1015 = vpack.c.b16 %v791, %v790
      %v1016 = vpack.c.b16 %v793, %v792
      %v1017 = vpack.c.b16 %v795, %v794
      %v1018 = vpack.c.b16 %v797, %v796
      %v1019 = vpack.c.b16 %v799, %v798
      %v1020 = vpack.c.b16 %v801, %v800
      %v1021 = vpack.c.b16 %v803, %v802
      %v1022 = vpack.c.b16 %v805, %v804
      %v1023 = vpack.c.b16 %v807, %v806
      %v1024 = vpack.c.b16 %v809, %v808
      %v1025 = vpack.c.b16 %v811, %v810
      %v1026 = vpack.c.b16 %v813, %v812
      %v1027 = vpack.c.b16 %v815, %v814
      %v1028 = vpack.c.b16 %v817, %v816
      %v1029 = vpack.c.b16 %v819, %v818
      %v1030 = vpack.c.b16 %v821, %v820
      %v1031 = vpack.c.b16 %v823, %v822
      %v1032 = vpack.c.b16 %v825, %v824
      %v1033 = vpack.c.b16 %v827, %v826
      %v1034 = vpack.c.b16 %v829, %v828
      %v1035 = vpack.c.b16 %v831, %v830
      %v1036 = vpack.c.b16 %v833, %v832
      %v1037 = vpack.c.b16 %v835, %v834
      %v1038 = vpack.c.b16 %v837, %v836
      %v1039 = vpack.c.b16 %v839, %v838
      %v1040 = vpack.c.b16 %v841, %v840
      %v1041 = vpack.c.b16 %v843, %v842
      %v1042 = vpack.c.b16 %v845, %v844
      %v1043 = vpack.c.b16 %v847, %v846
      %v1044 = vpack.c.b16 %v849, %v848
      %v1045 = vpack.c.b16 %v851, %v850
      %v1046 = vpack.c.b16 %v853, %v852
      %v1047 = vpack.c.b16 %v855, %v854
      %v1048 = vpack.c.b16 %v857, %v856
      %v1049 = vpack.c.b16 %v859, %v858
      %v1050 = vpack.c.b16 %v861, %v860
      %v1051 = vpack.c.b16 %v863, %v862
      %v1052 = vpack.c.b16 %v865, %v864
      %v1053 = vpack.c.b16 %v867, %v866
      %v1054 = vpack.c.b16 %v869, %v868
      %v1055 = vpack.c.b16 %v871, %v870
      %v1056 = vpack.c.b16 %v873, %v872
      %v1057 = vpack.c.b16 %v875, %v874
      %v1058 = vpack.c.b16 %v877, %v876
      %v1059 = vpack.c.b16 %v879, %v878
      %v1060 = vpack.c.b16 %v881, %v880
      %v1061 = vpack.c.b16 %v883, %v882
      %v1062 = vpack.c.b16 %v885, %v884
      %v1063 = vpack.c.b16 %v887, %v886
      %v1064 = vpack.c.b16 %v889, %v888
      %v1065 = vpack.c.b16 %v891, %v890
      %v1066 = vpack.c.b16 %v893, %v892
      %v1067 = vpack.c.b16 %v895, %v894
      %v1068 = vpack.c.b16 %v897, %v896
      %v1069 = vpack.c.b16 %v899, %v898
      %v1070 = vpack.c.b16 %v901, %v900
      %v1071 = vpack.c.b16 %v903, %v902
      %v1072 = vpack.c.b16 %v905, %v904
      %v1073 = vpack.c.b16 %v907, %v906
      %v1074 = vpack.c.b16 %v909, %v908
      %v1075 = vpack.c.b16 %v911, %v910
      %v1076 = vpack.c.b16 %v913, %v912
      %v1077 = vpack.c.b16 %v915, %v914
      %v1078 = vpack.c.b16 %v917, %v916
      %v1079 = vpack.c.b16 %v919, %v918
      %v1080 = vpack.c.b16 %v921, %v920
      %v1081 = vpack.c.b16 %v923, %v922
      %v1082 = vpack.c.b16 %v925, %v924
      %v1083 = vpack.c.b16 %v927, %v926
      %v1084 = vpack.c.b16 %v929, %v928
      %v1085 = vpack.c.b16 %v931, %v930
      %v1086 = vpack.c.b16 %v933, %v932
      %v1087 = vpack.c.b16 %v935, %v934
      %v1088 = vpack.c.b16 %v937, %v936
      %v1089 = vpack.c.b16 %v939, %v938
      %v1090 = vpack.c.b16 %v941, %v940
      %v1091 = vpack.c.b16 %v943, %v942
      %v1092 = vpack.c.b16 %v945, %v944
      %v1093 = vpack.c.b16 %v947, %v946
      %v1094 = vpack.c.b16 %v949, %v948
      %v1095 = vpack.c.b16 %v951, %v950
      %v1096 = vpack.c.b16 %v953, %v952
      %v1097 = vpack.c.b16 %v955, %v954
      %v1098 = vpack.c.b16 %v957, %v956
      %v1099 = vpack.c.b16 %v959, %v958
      %v1100 = vpack.c.b16 %v961, %v960
      %v1101 = vpack.c.b16 %v963, %v962
      %v1102 = vpack.c.b16 %v965, %v964
      %v1103 = vpack.c.b16 %v967, %v966
      %v1104 = vpack.c.b16 %v969, %v968
      %v1105 = vpack.c.b16 %v971, %v970
      %v1106 = vpack.c.b16 %v973, %v972
      %v1107 = vpack.c.b16 %v975, %v974
      %v1108 = vpack.c.b16 %v977, %v976
      %v1109 = vpack.c.b16 %v979, %v978
      %v1110 = vpack.c.b16 %v981, %v980
      %v1111 = vpack.c.b16 %v983, %v982
      %vm1112 = vcmask 523264
      %v1114 = vsel %vm1112, %v465, 0
      %v1117 = vsel %vm1112, %v984, 0
      %v1120 = vsel %vm1112, %v985, 0
      %v1123 = vsel %vm1112, %v986, 0
      %v1126 = vsel %vm1112, %v987, 0
      %v1129 = vsel %vm1112, %v988, 0
      %v1132 = vsel %vm1112, %v989, 0
      %v1135 = vsel %vm1112, %v990, 0
      %v1138 = vsel %vm1112, %v991, 0
      %v1141 = vsel %vm1112, %v992, 0
      %v1144 = vsel %vm1112, %v993, 0
      %v1147 = vsel %vm1112, %v994, 0
      %v1150 = vsel %vm1112, %v995, 0
      %v1153 = vsel %vm1112, %v996, 0
      %v1156 = vsel %vm1112, %v997, 0
      %v1159 = vsel %vm1112, %v998, 0
      %v1162 = vsel %vm1112, %v999, 0
      %v1165 = vsel %vm1112, %v1000, 0
      %v1168 = vsel %vm1112, %v1001, 0
      %v1171 = vsel %vm1112, %v1002, 0
      %v1174 = vsel %vm1112, %v1003, 0
      %v1177 = vsel %vm1112, %v1004, 0
      %v1180 = vsel %vm1112, %v1005, 0
      %v1183 = vsel %vm1112, %v1006, 0
      %v1186 = vsel %vm1112, %v1007, 0
      %v1189 = vsel %vm1112, %v1008, 0
      %v1192 = vsel %vm1112, %v1009, 0
      %v1195 = vsel %vm1112, %v1010, 0
      %v1198 = vsel %vm1112, %v1011, 0
      %v1201 = vsel %vm1112, %v1012, 0
      %v1204 = vsel %vm1112, %v1013, 0
      %v1207 = vsel %vm1112, %v1014, 0
      %v1210 = vsel %vm1112, %v1015, 0
      %v1213 = vsel %vm1112, %v1016, 0
      %v1216 = vsel %vm1112, %v1017, 0
      %v1219 = vsel %vm1112, %v1018, 0
      %v1222 = vsel %vm1112, %v1019, 0
      %v1225 = vsel %vm1112, %v1020, 0
      %v1228 = vsel %vm1112, %v1021, 0
      %v1231 = vsel %vm1112, %v1022, 0
      %v1234 = vsel %vm1112, %v1023, 0
      %v1237 = vsel %vm1112, %v1024, 0
      %v1240 = vsel %vm1112, %v1025, 0
      %v1243 = vsel %vm1112, %v1026, 0
      %v1246 = vsel %vm1112, %v1027, 0
      %v1249 = vsel %vm1112, %v1028, 0
      %v1252 = vsel %vm1112, %v1029, 0
      %v1255 = vsel %vm1112, %v1030, 0
      %v1258 = vsel %vm1112, %v1031, 0
      %v1261 = vsel %vm1112, %v1032, 0
      %v1264 = vsel %vm1112, %v1033, 0
      %v1267 = vsel %vm1112, %v1034, 0
      %v1270 = vsel %vm1112, %v1035, 0
      %v1273 = vsel %vm1112, %v1036, 0
      %v1276 = vsel %vm1112, %v1037, 0
      %v1279 = vsel %vm1112, %v1038, 0
      %v1282 = vsel %vm1112, %v1039, 0
      %v1285 = vsel %vm1112, %v1040, 0
      %v1288 = vsel %vm1112, %v1041, 0
      %v1291 = vsel %vm1112, %v1042, 0
      %v1294 = vsel %vm1112, %v1043, 0
      %v1297 = vsel %vm1112, %v1044, 0
      %v1300 = vsel %vm1112, %v1045, 0
      %v1303 = vsel %vm1112, %v1046, 0
      %v1306 = vsel %vm1112, %v1047, 0
      %v1309 = vsel %vm1112, %v1048, 0
      %v1312 = vsel %vm1112, %v1049, 0
      %v1315 = vsel %vm1112, %v1050, 0
      %v1318 = vsel %vm1112, %v1051, 0
      %v1321 = vsel %vm1112, %v1052, 0
      %v1324 = vsel %vm1112, %v1053, 0
      %v1327 = vsel %vm1112, %v1054, 0
      %v1330 = vsel %vm1112, %v1055, 0
      %v1333 = vsel %vm1112, %v1056, 0
      %v1336 = vsel %vm1112, %v1057, 0
      %v1339 = vsel %vm1112, %v1058, 0
      %v1342 = vsel %vm1112, %v1059, 0
      %v1345 = vsel %vm1112, %v1060, 0
      %v1348 = vsel %vm1112, %v1061, 0
      %v1351 = vsel %vm1112, %v1062, 0
      %v1354 = vsel %vm1112, %v1063, 0
      %v1357 = vsel %vm1112, %v1064, 0
      %v1360 = vsel %vm1112, %v1065, 0
      %v1363 = vsel %vm1112, %v1066, 0
      %v1366 = vsel %vm1112, %v1067, 0
      %v1369 = vsel %vm1112, %v1068, 0
      %v1372 = vsel %vm1112, %v1069, 0
      %v1375 = vsel %vm1112, %v1070, 0
      %v1378 = vsel %vm1112, %v1071, 0
      %v1381 = vsel %vm1112, %v1072, 0
      %v1384 = vsel %vm1112, %v1073, 0
      %v1387 = vsel %vm1112, %v1074, 0
      %v1390 = vsel %vm1112, %v1075, 0
      %v1393 = vsel %vm1112, %v1076, 0
      %v1396 = vsel %vm1112, %v1077, 0
      %v1399 = vsel %vm1112, %v1078, 0
      %v1402 = vsel %vm1112, %v1079, 0
      %v1405 = vsel %vm1112, %v1080, 0
      %v1408 = vsel %vm1112, %v1081, 0
      %v1411 = vsel %vm1112, %v1082, 0
      %v1414 = vsel %vm1112, %v1083, 0
      %v1417 = vsel %vm1112, %v1084, 0
      %v1420 = vsel %vm1112, %v1085, 0
      %v1423 = vsel %vm1112, %v1086, 0
      %v1426 = vsel %vm1112, %v1087, 0
      %v1429 = vsel %vm1112, %v1088, 0
      %v1432 = vsel %vm1112, %v1089, 0
      %v1435 = vsel %vm1112, %v1090, 0
      %v1438 = vsel %vm1112, %v1091, 0
      %v1441 = vsel %vm1112, %v1092, 0
      %v1444 = vsel %vm1112, %v1093, 0
      %v1447 = vsel %vm1112, %v1094, 0
      %v1450 = vsel %vm1112, %v1095, 0
      %v1453 = vsel %vm1112, %v1096, 0
      %v1456 = vsel %vm1112, %v1097, 0
      %v1459 = vsel %vm1112, %v1098, 0
      %v1462 = vsel %vm1112, %v1099, 0
      %v1465 = vsel %vm1112, %v1100, 0
      %v1468 = vsel %vm1112, %v1101, 0
      %v1471 = vsel %vm1112, %v1102, 0
      %v1474 = vsel %vm1112, %v1103, 0
      %v1477 = vsel %vm1112, %v1104, 0
      %v1480 = vsel %vm1112, %v1105, 0
      %v1483 = vsel %vm1112, %v1106, 0
      %v1486 = vsel %vm1112, %v1107, 0
      %v1489 = vsel %vm1112, %v1108, 0
      %v1492 = vsel %vm1112, %v1109, 0
      %v1495 = vsel %vm1112, %v1110, 0
      %v1498 = vsel %vm1112, %v1111, 0
      %1500 = vmatprep.subr.bf16.mxu0 0
      %1501 = vmatpush1.bf16.xpose.msra.mxu0 %v1117
      %1502 = vmatprep.subr.bf16.mxu0 0
      %1503 = vmatpush1.bf16.xpose.msra.mxu0 %v1120
      %1504 = vmatprep.subr.bf16.mxu0 0
      %1505 = vmatpush1.bf16.xpose.msra.mxu0 %v1123
      %1506 = vmatprep.subr.bf16.mxu0 0
      %1507 = vmatpush1.bf16.xpose.msra.mxu0 %v1126
      %1508 = vmatprep.subr.bf16.mxu0 0
      %1509 = vmatpush1.bf16.xpose.msra.mxu0 %v1129
      %1510 = vmatprep.subr.bf16.mxu0 0
      %1511 = vmatpush1.bf16.xpose.msra.mxu0 %v1132
      %1512 = vmatprep.subr.bf16.mxu0 0
      %1513 = vmatpush1.bf16.xpose.msra.mxu0 %v1135
      %1514 = vmatprep.subr.bf16.mxu0 0
      %1515 = vmatpush1.bf16.xpose.msra.mxu0 %v1138
      %1516 = vmatprep.subr.bf16.mxu0 0
      %1517 = vmatpush1.bf16.xpose.msra.mxu0 %v1141
      %1518 = vmatprep.subr.bf16.mxu0 0
      %1519 = vmatpush1.bf16.xpose.msra.mxu0 %v1144
      %1520 = vmatprep.subr.bf16.mxu0 0
      %1521 = vmatpush1.bf16.xpose.msra.mxu0 %v1147
      %1522 = vmatprep.subr.bf16.mxu0 0
      %1523 = vmatpush1.bf16.xpose.msra.mxu0 %v1150
      %1524 = vmatprep.subr.bf16.mxu0 0
      %1525 = vmatpush1.bf16.xpose.msra.mxu0 %v1153
      %1526 = vmatprep.subr.bf16.mxu0 0
      %1527 = vmatpush1.bf16.xpose.msra.mxu0 %v1156
      %1528 = vmatprep.subr.bf16.mxu0 0
      %1529 = vmatpush1.bf16.xpose.msra.mxu0 %v1159
      %1530 = vmatprep.subr.bf16.mxu0 0
      %1531 = vmatpush1.bf16.xpose.msra.mxu0 %v1162
      %1532 = vmatprep.mubr.bf16.mxu0 0
      %1533 = vmatmul.mubr.bf16.gmra.mrb[0].mxu0 %v1114
      %v1534 = vpop.f32.mrb[0].mxu0
      %v1535 = vadd.f32 %v470, %v1534
      %v1536 = vpop.f32.mrb[0].mxu0
      %v1537 = vadd.f32 %v470, %v1536
      %v1538 = vpop.f32.mrb[0].mxu0
      %v1539 = vpop.f32.mrb[0].mxu0
      %1540 = vdwg.mxu0
      %1541 = vmatprep.subr.bf16.mxu0 0
      %1542 = vmatpush1.bf16.xpose.msra.mxu0 %v1165
      %1543 = vmatprep.subr.bf16.mxu0 0
      %1544 = vmatpush1.bf16.xpose.msra.mxu0 %v1168
      %1545 = vmatprep.subr.bf16.mxu0 0
      %1546 = vmatpush1.bf16.xpose.msra.mxu0 %v1171
      %1547 = vmatprep.subr.bf16.mxu0 0
      %1548 = vmatpush1.bf16.xpose.msra.mxu0 %v1174
      %1549 = vmatprep.subr.bf16.mxu0 0
      %1550 = vmatpush1.bf16.xpose.msra.mxu0 %v1177
      %1551 = vmatprep.subr.bf16.mxu0 0
      %1552 = vmatpush1.bf16.xpose.msra.mxu0 %v1180
      %1553 = vmatprep.subr.bf16.mxu0 0
      %1554 = vmatpush1.bf16.xpose.msra.mxu0 %v1183
      %1555 = vmatprep.subr.bf16.mxu0 0
      %1556 = vmatpush1.bf16.xpose.msra.mxu0 %v1186
      %1557 = vmatprep.subr.bf16.mxu0 0
      %1558 = vmatpush1.bf16.xpose.msra.mxu0 %v1189
      %1559 = vmatprep.subr.bf16.mxu0 0
      %1560 = vmatpush1.bf16.xpose.msra.mxu0 %v1192
      %1561 = vmatprep.subr.bf16.mxu0 0
      %1562 = vmatpush1.bf16.xpose.msra.mxu0 %v1195
      %1563 = vmatprep.subr.bf16.mxu0 0
      %1564 = vmatpush1.bf16.xpose.msra.mxu0 %v1198
      %1565 = vmatprep.subr.bf16.mxu0 0
      %1566 = vmatpush1.bf16.xpose.msra.mxu0 %v1201
      %1567 = vmatprep.subr.bf16.mxu0 0
      %1568 = vmatpush1.bf16.xpose.msra.mxu0 %v1204
      %1569 = vmatprep.subr.bf16.mxu0 0
      %1570 = vmatpush1.bf16.xpose.msra.mxu0 %v1207
      %1571 = vmatprep.subr.bf16.mxu0 0
      %1572 = vmatpush1.bf16.xpose.msra.mxu0 %v1210
      %1573 = vmatprep.mubr.bf16.mxu0 0
      %1574 = vmatmul.mubr.bf16.gmra.mrb[0].mxu0 %v1114
      %v1575 = vpop.f32.mrb[0].mxu0
      %v1576 = vadd.f32 %v470, %v1575
      %v1577 = vpop.f32.mrb[0].mxu0
      %v1578 = vadd.f32 %v470, %v1577
      %v1579 = vpop.f32.mrb[0].mxu0
      %v1580 = vpop.f32.mrb[0].mxu0
      %1581 = vdwg.mxu0
      %1582 = vmatprep.subr.bf16.mxu0 0
      %1583 = vmatpush1.bf16.xpose.msra.mxu0 %v1213
      %1584 = vmatprep.subr.bf16.mxu0 0
      %1585 = vmatpush1.bf16.xpose.msra.mxu0 %v1216
      %1586 = vmatprep.subr.bf16.mxu0 0
      %1587 = vmatpush1.bf16.xpose.msra.mxu0 %v1219
      %1588 = vmatprep.subr.bf16.mxu0 0
      %1589 = vmatpush1.bf16.xpose.msra.mxu0 %v1222
      %1590 = vmatprep.subr.bf16.mxu0 0
      %1591 = vmatpush1.bf16.xpose.msra.mxu0 %v1225
      %1592 = vmatprep.subr.bf16.mxu0 0
      %1593 = vmatpush1.bf16.xpose.msra.mxu0 %v1228
      %1594 = vmatprep.subr.bf16.mxu0 0
      %1595 = vmatpush1.bf16.xpose.msra.mxu0 %v1231
      %1596 = vmatprep.subr.bf16.mxu0 0
      %1597 = vmatpush1.bf16.xpose.msra.mxu0 %v1234
      %1598 = vmatprep.subr.bf16.mxu0 0
      %1599 = vmatpush1.bf16.xpose.msra.mxu0 %v1237
      %1600 = vmatprep.subr.bf16.mxu0 0
      %1601 = vmatpush1.bf16.xpose.msra.mxu0 %v1240
      %1602 = vmatprep.subr.bf16.mxu0 0
      %1603 = vmatpush1.bf16.xpose.msra.mxu0 %v1243
      %1604 = vmatprep.subr.bf16.mxu0 0
      %1605 = vmatpush1.bf16.xpose.msra.mxu0 %v1246
      %1606 = vmatprep.subr.bf16.mxu0 0
      %1607 = vmatpush1.bf16.xpose.msra.mxu0 %v1249
      %1608 = vmatprep.subr.bf16.mxu0 0
      %1609 = vmatpush1.bf16.xpose.msra.mxu0 %v1252
      %1610 = vmatprep.subr.bf16.mxu0 0
      %1611 = vmatpush1.bf16.xpose.msra.mxu0 %v1255
      %1612 = vmatprep.subr.bf16.mxu0 0
      %1613 = vmatpush1.bf16.xpose.msra.mxu0 %v1258
      %1614 = vmatprep.mubr.bf16.mxu0 0
      %1615 = vmatmul.mubr.bf16.gmra.mrb[0].mxu0 %v1114
      %v1616 = vpop.f32.mrb[0].mxu0
      %v1617 = vadd.f32 %v470, %v1616
      %v1618 = vpop.f32.mrb[0].mxu0
      %v1619 = vadd.f32 %v470, %v1618
      %v1620 = vpop.f32.mrb[0].mxu0
      %v1621 = vpop.f32.mrb[0].mxu0
      %1622 = vdwg.mxu0
      %1623 = vmatprep.subr.bf16.mxu0 0
      %1624 = vmatpush1.bf16.xpose.msra.mxu0 %v1261
      %1625 = vmatprep.subr.bf16.mxu0 0
      %1626 = vmatpush1.bf16.xpose.msra.mxu0 %v1264
      %1627 = vmatprep.subr.bf16.mxu0 0
      %1628 = vmatpush1.bf16.xpose.msra.mxu0 %v1267
      %1629 = vmatprep.subr.bf16.mxu0 0
      %1630 = vmatpush1.bf16.xpose.msra.mxu0 %v1270
      %1631 = vmatprep.subr.bf16.mxu0 0
      %1632 = vmatpush1.bf16.xpose.msra.mxu0 %v1273
      %1633 = vmatprep.subr.bf16.mxu0 0
      %1634 = vmatpush1.bf16.xpose.msra.mxu0 %v1276
      %1635 = vmatprep.subr.bf16.mxu0 0
      %1636 = vmatpush1.bf16.xpose.msra.mxu0 %v1279
      %1637 = vmatprep.subr.bf16.mxu0 0
      %1638 = vmatpush1.bf16.xpose.msra.mxu0 %v1282
      %1639 = vmatprep.subr.bf16.mxu0 0
      %1640 = vmatpush1.bf16.xpose.msra.mxu0 %v1285
      %1641 = vmatprep.subr.bf16.mxu0 0
      %1642 = vmatpush1.bf16.xpose.msra.mxu0 %v1288
      %1643 = vmatprep.subr.bf16.mxu0 0
      %1644 = vmatpush1.bf16.xpose.msra.mxu0 %v1291
      %1645 = vmatprep.subr.bf16.mxu0 0
      %1646 = vmatpush1.bf16.xpose.msra.mxu0 %v1294
      %1647 = vmatprep.subr.bf16.mxu0 0
      %1648 = vmatpush1.bf16.xpose.msra.mxu0 %v1297
      %1649 = vmatprep.subr.bf16.mxu0 0
      %1650 = vmatpush1.bf16.xpose.msra.mxu0 %v1300
      %1651 = vmatprep.subr.bf16.mxu0 0
      %1652 = vmatpush1.bf16.xpose.msra.mxu0 %v1303
      %1653 = vmatprep.subr.bf16.mxu0 0
      %1654 = vmatpush1.bf16.xpose.msra.mxu0 %v1306
      %1655 = vmatprep.mubr.bf16.mxu0 0
      %1656 = vmatmul.mubr.bf16.gmra.mrb[0].mxu0 %v1114
      %v1657 = vpop.f32.mrb[0].mxu0
      %v1658 = vadd.f32 %v470, %v1657
      %v1659 = vpop.f32.mrb[0].mxu0
      %v1660 = vadd.f32 %v470, %v1659
      %v1661 = vpop.f32.mrb[0].mxu0
      %v1662 = vpop.f32.mrb[0].mxu0
      %1663 = vdwg.mxu0
      %1664 = vmatprep.subr.bf16.mxu0 0
      %1665 = vmatpush1.bf16.xpose.msra.mxu0 %v1309
      %1666 = vmatprep.subr.bf16.mxu0 0
      %1667 = vmatpush1.bf16.xpose.msra.mxu0 %v1312
      %1668 = vmatprep.subr.bf16.mxu0 0
      %1669 = vmatpush1.bf16.xpose.msra.mxu0 %v1315
      %1670 = vmatprep.subr.bf16.mxu0 0
      %1671 = vmatpush1.bf16.xpose.msra.mxu0 %v1318
      %1672 = vmatprep.subr.bf16.mxu0 0
      %1673 = vmatpush1.bf16.xpose.msra.mxu0 %v1321
      %1674 = vmatprep.subr.bf16.mxu0 0
      %1675 = vmatpush1.bf16.xpose.msra.mxu0 %v1324
      %1676 = vmatprep.subr.bf16.mxu0 0
      %1677 = vmatpush1.bf16.xpose.msra.mxu0 %v1327
      %1678 = vmatprep.subr.bf16.mxu0 0
      %1679 = vmatpush1.bf16.xpose.msra.mxu0 %v1330
      %1680 = vmatprep.subr.bf16.mxu0 0
      %1681 = vmatpush1.bf16.xpose.msra.mxu0 %v1333
      %1682 = vmatprep.subr.bf16.mxu0 0
      %1683 = vmatpush1.bf16.xpose.msra.mxu0 %v1336
      %1684 = vmatprep.subr.bf16.mxu0 0
      %1685 = vmatpush1.bf16.xpose.msra.mxu0 %v1339
      %1686 = vmatprep.subr.bf16.mxu0 0
      %1687 = vmatpush1.bf16.xpose.msra.mxu0 %v1342
      %1688 = vmatprep.subr.bf16.mxu0 0
      %1689 = vmatpush1.bf16.xpose.msra.mxu0 %v1345
      %1690 = vmatprep.subr.bf16.mxu0 0
      %1691 = vmatpush1.bf16.xpose.msra.mxu0 %v1348
      %1692 = vmatprep.subr.bf16.mxu0 0
      %1693 = vmatpush1.bf16.xpose.msra.mxu0 %v1351
      %1694 = vmatprep.subr.bf16.mxu0 0
      %1695 = vmatpush1.bf16.xpose.msra.mxu0 %v1354
      %1696 = vmatprep.mubr.bf16.mxu0 0
      %1697 = vmatmul.mubr.bf16.gmra.mrb[0].mxu0 %v1114
      %v1698 = vpop.f32.mrb[0].mxu0
      %v1699 = vadd.f32 %v470, %v1698
      %v1700 = vpop.f32.mrb[0].mxu0
      %v1701 = vadd.f32 %v470, %v1700
      %v1702 = vpop.f32.mrb[0].mxu0
      %v1703 = vpop.f32.mrb[0].mxu0
      %1704 = vdwg.mxu0
      %1705 = vmatprep.subr.bf16.mxu0 0
      %1706 = vmatpush1.bf16.xpose.msra.mxu0 %v1357
      %1707 = vmatprep.subr.bf16.mxu0 0
      %1708 = vmatpush1.bf16.xpose.msra.mxu0 %v1360
      %1709 = vmatprep.subr.bf16.mxu0 0
      %1710 = vmatpush1.bf16.xpose.msra.mxu0 %v1363
      %1711 = vmatprep.subr.bf16.mxu0 0
      %1712 = vmatpush1.bf16.xpose.msra.mxu0 %v1366
      %1713 = vmatprep.subr.bf16.mxu0 0
      %1714 = vmatpush1.bf16.xpose.msra.mxu0 %v1369
      %1715 = vmatprep.subr.bf16.mxu0 0
      %1716 = vmatpush1.bf16.xpose.msra.mxu0 %v1372
      %1717 = vmatprep.subr.bf16.mxu0 0
      %1718 = vmatpush1.bf16.xpose.msra.mxu0 %v1375
      %1719 = vmatprep.subr.bf16.mxu0 0
      %1720 = vmatpush1.bf16.xpose.msra.mxu0 %v1378
      %1721 = vmatprep.subr.bf16.mxu0 0
      %1722 = vmatpush1.bf16.xpose.msra.mxu0 %v1381
      %1723 = vmatprep.subr.bf16.mxu0 0
      %1724 = vmatpush1.bf16.xpose.msra.mxu0 %v1384
      %1725 = vmatprep.subr.bf16.mxu0 0
      %1726 = vmatpush1.bf16.xpose.msra.mxu0 %v1387
      %1727 = vmatprep.subr.bf16.mxu0 0
      %1728 = vmatpush1.bf16.xpose.msra.mxu0 %v1390
      %1729 = vmatprep.subr.bf16.mxu0 0
      %1730 = vmatpush1.bf16.xpose.msra.mxu0 %v1393
      %1731 = vmatprep.subr.bf16.mxu0 0
      %1732 = vmatpush1.bf16.xpose.msra.mxu0 %v1396
      %1733 = vmatprep.subr.bf16.mxu0 0
      %1734 = vmatpush1.bf16.xpose.msra.mxu0 %v1399
      %1735 = vmatprep.subr.bf16.mxu0 0
      %1736 = vmatpush1.bf16.xpose.msra.mxu0 %v1402
      %1737 = vmatprep.mubr.bf16.mxu0 0
      %1738 = vmatmul.mubr.bf16.gmra.mrb[0].mxu0 %v1114
      %v1739 = vpop.f32.mrb[0].mxu0
      %v1740 = vadd.f32 %v470, %v1739
      %v1741 = vpop.f32.mrb[0].mxu0
      %v1742 = vadd.f32 %v470, %v1741
      %v1743 = vpop.f32.mrb[0].mxu0
      %v1744 = vpop.f32.mrb[0].mxu0
      %1745 = vdwg.mxu0
      %1746 = vmatprep.subr.bf16.mxu0 0
      %1747 = vmatpush1.bf16.xpose.msra.mxu0 %v1405
      %1748 = vmatprep.subr.bf16.mxu0 0
      %1749 = vmatpush1.bf16.xpose.msra.mxu0 %v1408
      %1750 = vmatprep.subr.bf16.mxu0 0
      %1751 = vmatpush1.bf16.xpose.msra.mxu0 %v1411
      %1752 = vmatprep.subr.bf16.mxu0 0
      %1753 = vmatpush1.bf16.xpose.msra.mxu0 %v1414
      %1754 = vmatprep.subr.bf16.mxu0 0
      %1755 = vmatpush1.bf16.xpose.msra.mxu0 %v1417
      %1756 = vmatprep.subr.bf16.mxu0 0
      %1757 = vmatpush1.bf16.xpose.msra.mxu0 %v1420
      %1758 = vmatprep.subr.bf16.mxu0 0
      %1759 = vmatpush1.bf16.xpose.msra.mxu0 %v1423
      %1760 = vmatprep.subr.bf16.mxu0 0
      %1761 = vmatpush1.bf16.xpose.msra.mxu0 %v1426
      %1762 = vmatprep.subr.bf16.mxu0 0
      %1763 = vmatpush1.bf16.xpose.msra.mxu0 %v1429
      %1764 = vmatprep.subr.bf16.mxu0 0
      %1765 = vmatpush1.bf16.xpose.msra.mxu0 %v1432
      %1766 = vmatprep.subr.bf16.mxu0 0
      %1767 = vmatpush1.bf16.xpose.msra.mxu0 %v1435
      %1768 = vmatprep.subr.bf16.mxu0 0
      %1769 = vmatpush1.bf16.xpose.msra.mxu0 %v1438
      %1770 = vmatprep.subr.bf16.mxu0 0
      %1771 = vmatpush1.bf16.xpose.msra.mxu0 %v1441
      %1772 = vmatprep.subr.bf16.mxu0 0
      %1773 = vmatpush1.bf16.xpose.msra.mxu0 %v1444
      %1774 = vmatprep.subr.bf16.mxu0 0
      %1775 = vmatpush1.bf16.xpose.msra.mxu0 %v1447
      %1776 = vmatprep.subr.bf16.mxu0 0
      %1777 = vmatpush1.bf16.xpose.msra.mxu0 %v1450
      %1778 = vmatprep.mubr.bf16.mxu0 0
      %1779 = vmatmul.mubr.bf16.gmra.mrb[0].mxu0 %v1114
      %v1780 = vpop.f32.mrb[0].mxu0
      %v1781 = vadd.f32 %v470, %v1780
      %v1782 = vpop.f32.mrb[0].mxu0
      %v1783 = vadd.f32 %v470, %v1782
      %v1784 = vpop.f32.mrb[0].mxu0
      %v1785 = vpop.f32.mrb[0].mxu0
      %1786 = vdwg.mxu0
      %1787 = vmatprep.subr.bf16.mxu0 0
      %1788 = vmatpush1.bf16.xpose.msra.mxu0 %v1453
      %1789 = vmatprep.subr.bf16.mxu0 0
      %1790 = vmatpush1.bf16.xpose.msra.mxu0 %v1456
      %1791 = vmatprep.subr.bf16.mxu0 0
      %1792 = vmatpush1.bf16.xpose.msra.mxu0 %v1459
      %1793 = vmatprep.subr.bf16.mxu0 0
      %1794 = vmatpush1.bf16.xpose.msra.mxu0 %v1462
      %1795 = vmatprep.subr.bf16.mxu0 0
      %1796 = vmatpush1.bf16.xpose.msra.mxu0 %v1465
      %1797 = vmatprep.subr.bf16.mxu0 0
      %1798 = vmatpush1.bf16.xpose.msra.mxu0 %v1468
      %1799 = vmatprep.subr.bf16.mxu0 0
      %1800 = vmatpush1.bf16.xpose.msra.mxu0 %v1471
      %1801 = vmatprep.subr.bf16.mxu0 0
      %1802 = vmatpush1.bf16.xpose.msra.mxu0 %v1474
      %1803 = vmatprep.subr.bf16.mxu0 0
      %1804 = vmatpush1.bf16.xpose.msra.mxu0 %v1477
      %1805 = vmatprep.subr.bf16.mxu0 0
      %1806 = vmatpush1.bf16.xpose.msra.mxu0 %v1480
      %1807 = vmatprep.subr.bf16.mxu0 0
      %1808 = vmatpush1.bf16.xpose.msra.mxu0 %v1483
      %1809 = vmatprep.subr.bf16.mxu0 0
      %1810 = vmatpush1.bf16.xpose.msra.mxu0 %v1486
      %1811 = vmatprep.subr.bf16.mxu0 0
      %1812 = vmatpush1.bf16.xpose.msra.mxu0 %v1489
      %1813 = vmatprep.subr.bf16.mxu0 0
      %1814 = vmatpush1.bf16.xpose.msra.mxu0 %v1492
      %1815 = vmatprep.subr.bf16.mxu0 0
      %1816 = vmatpush1.bf16.xpose.msra.mxu0 %v1495
      %1817 = vmatprep.subr.bf16.mxu0 0
      %1818 = vmatpush1.bf16.xpose.msra.mxu0 %v1498
      %1819 = vmatprep.mubr.bf16.mxu0 0
      %1820 = vmatmul.mubr.bf16.gmra.mrb[0].mxu0 %v1114
      %v1821 = vpop.f32.mrb[0].mxu0
      %v1822 = vadd.f32 %v470, %v1821
      %v1823 = vpop.f32.mrb[0].mxu0
      %v1824 = vadd.f32 %v470, %v1823
      %v1825 = vpop.f32.mrb[0].mxu0
      %v1826 = vpop.f32.mrb[0].mxu0
      %1827 = vdwg.mxu0
      %v1828 = vpack.c.bf16 %v1535, %v1535
      %v1829 = vpack.c.bf16 %v1537, %v1537
      %v1830 = vpack.c.bf16 %v1576, %v1576
      %v1831 = vpack.c.bf16 %v1578, %v1578
      %v1832 = vpack.c.bf16 %v1617, %v1617
      %v1833 = vpack.c.bf16 %v1619, %v1619
      %v1834 = vpack.c.bf16 %v1658, %v1658
      %v1835 = vpack.c.bf16 %v1660, %v1660
      %v1836 = vpack.c.bf16 %v1699, %v1699
      %v1837 = vpack.c.bf16 %v1701, %v1701
      %v1838 = vpack.c.bf16 %v1740, %v1740
      %v1839 = vpack.c.bf16 %v1742, %v1742
      %v1840 = vpack.c.bf16 %v1781, %v1781
      %v1841 = vpack.c.bf16 %v1783, %v1783
      %v1842 = vpack.c.bf16 %v1822, %v1822
      %v1843 = vpack.c.bf16 %v1824, %v1824
      %v1860 = vcombine.low %v1828, %v1829
      %v1861 = vcombine.low %v1830, %v1831
      %v1862 = vcombine.low %v1832, %v1833
      %v1863 = vcombine.low %v1834, %v1835
      %v1865 = vunpack.c.l.s4 1966171168
      %v1866 = vunpack.c.0.s8 %v1865
      %v1867 = vlaneseq
      %v1868 = vshrl.u32 %v1867, 7
      %v1869 = vsub.s32 %v1866, %v1868
      %v1870 = vrot.slane %v1860, %v1869
      %v1872 = vunpack.c.l.s4 1966171168
      %v1873 = vunpack.c.0.s8 %v1872
      %v1874 = vlaneseq
      %v1875 = vshrl.u32 %v1874, 7
      %v1876 = vsub.s32 %v1873, %v1875
      %v1877 = vrot.slane %v1861, %v1876
      %v1879 = vunpack.c.l.s4 1966171168
      %v1880 = vunpack.c.0.s8 %v1879
      %v1881 = vlaneseq
      %v1882 = vshrl.u32 %v1881, 7
      %v1883 = vsub.s32 %v1880, %v1882
      %v1884 = vrot.slane %v1862, %v1883
      %v1886 = vunpack.c.l.s4 1966171168
      %v1887 = vunpack.c.0.s8 %v1886
      %v1888 = vlaneseq
      %v1889 = vshrl.u32 %v1888, 7
      %v1890 = vsub.s32 %v1887, %v1889
      %v1891 = vrot.slane %v1863, %v1890
      %v1892 = vcombine.low %v1870, %v1877
      %v1893 = vcombine.low %v1884, %v1891
      %v1895 = vunpack.c.l.s4 1966171168
      %v1896 = vunpack.c.0.s8 %v1895
      %v1897 = vlaneseq
      %v1898 = vshrl.u32 %v1897, 7
      %v1899 = vsub.s32 %v1896, %v1898
      %v1900 = vrot.slane %v1892, %v1899
      %v1902 = vunpack.c.l.s4 1966171168
      %v1903 = vunpack.c.0.s8 %v1902
      %v1904 = vlaneseq
      %v1905 = vshrl.u32 %v1904, 7
      %v1906 = vsub.s32 %v1903, %v1905
      %v1907 = vrot.slane %v1893, %v1906
      %v1908 = vcombine.low %v1900, %v1907
      %v1909 = vcombine.low %v1836, %v1837
      %v1910 = vcombine.low %v1838, %v1839
      %v1911 = vcombine.low %v1840, %v1841
      %v1912 = vcombine.low %v1842, %v1843
      %v1914 = vunpack.c.l.s4 1966171168
      %v1915 = vunpack.c.0.s8 %v1914
      %v1916 = vlaneseq
      %v1917 = vshrl.u32 %v1916, 7
      %v1918 = vsub.s32 %v1915, %v1917
      %v1919 = vrot.slane %v1909, %v1918
      %v1921 = vunpack.c.l.s4 1966171168
      %v1922 = vunpack.c.0.s8 %v1921
      %v1923 = vlaneseq
      %v1924 = vshrl.u32 %v1923, 7
      %v1925 = vsub.s32 %v1922, %v1924
      %v1926 = vrot.slane %v1910, %v1925
      %v1928 = vunpack.c.l.s4 1966171168
      %v1929 = vunpack.c.0.s8 %v1928
      %v1930 = vlaneseq
      %v1931 = vshrl.u32 %v1930, 7
      %v1932 = vsub.s32 %v1929, %v1931
      %v1933 = vrot.slane %v1911, %v1932
      %v1935 = vunpack.c.l.s4 1966171168
      %v1936 = vunpack.c.0.s8 %v1935
      %v1937 = vlaneseq
      %v1938 = vshrl.u32 %v1937, 7
      %v1939 = vsub.s32 %v1936, %v1938
      %v1940 = vrot.slane %v1912, %v1939
      %v1941 = vcombine.low %v1919, %v1926
      %v1942 = vcombine.low %v1933, %v1940
      %v1944 = vunpack.c.l.s4 1966171168
      %v1945 = vunpack.c.0.s8 %v1944
      %v1946 = vlaneseq
      %v1947 = vshrl.u32 %v1946, 7
      %v1948 = vsub.s32 %v1945, %v1947
      %v1949 = vrot.slane %v1941, %v1948
      %v1951 = vunpack.c.l.s4 1966171168
      %v1952 = vunpack.c.0.s8 %v1951
      %v1953 = vlaneseq
      %v1954 = vshrl.u32 %v1953, 7
      %v1955 = vsub.s32 %v1952, %v1954
      %v1956 = vrot.slane %v1942, %v1955
      %v1957 = vcombine.low %v1949, %v1956
      %1960 = vst [vmem:[%s206] sm:$0xff] %v1908
      %1961 = vst [vmem:[%s206 + $0x8] sm:$0xff] %v1957
      %s1962 = smul.u32 16, %s19
      %p1963 = scmp.lt.s32.totalorder %s18, 1
      %s1964 = scalar_select %p1963, %s18, 1
      %p1965 = scmp.lt.s32.totalorder %s1962, 31
      %s1966 = scalar_select %p1965, %s1962, 31
      %s1967 = smul.addr %s1964, 32
      %s1968 = sadd.s32 %s1966, %s1967
      %s1969 = scalar_lea.vmem %s3, %s1968
      // Predicated region
      $region33: #{qa_head_pallas.1} parent=31 // pred_check
        %p1970 = pneg %p116
      $region34: #{qa_head_pallas.1} parent=31 // pred_check_branch
        %1972 = sbr.rel (%p1970) target = $region36
      $region35: #{qa_head_pallas.1} parent=31 // pred_region
        %s1973 = smul.u32 16, %s19
      $region36: #{qa_head_pallas.1} parent=31 // pred_fallthru
        _
    $region32: #{qa_head_pallas.1} parent=5 // pred_fallthru
      _
    %p1974 = scmp.le.s32.totalorder 2, %s9
    // Predicated region
    $region37: #{qa_head_pallas.1} parent=5 // pred_check
      %p1975 = pneg %p1974
    $region38: #{qa_head_pallas.1} parent=5 // pred_check_branch
      %1977 = sbr.rel (%p1975) target = $region40
    $region39: #{qa_head_pallas.1} parent=5 // pred_region
      %s1978 = ssub.s32 %s9, 2
      // Predicated region
      $region41: #{qa_head_pallas.1} parent=39 // pred_check
        %p1979 = pneg %p122
      $region42: #{qa_head_pallas.1} parent=39 // pred_check_branch
        %1981 = sbr.rel (%p1979) target = $region44
      $region43: #{qa_head_pallas.1} parent=39 // pred_region
        %s1982 = smul.u32 16, %s21
        %p1983 = scmp.lt.s32.totalorder %s20, 1
        %s1984 = scalar_select %p1983, %s20, 1
        %p1985 = scmp.lt.s32.totalorder %s1982, 31
        %s1986 = scalar_select %p1985, %s1982, 31
        %s1987 = smul.addr %s1984, 32
        %s1988 = sadd.s32 %s1986, %s1987
        %s1989 = scalar_lea.vmem %s3, %s1988
      $region44: #{qa_head_pallas.1} parent=39 // pred_fallthru
        _
    $region40: #{qa_head_pallas.1} parent=5 // pred_fallthru
      _
  $region6: #{qa_head_pallas.1} parent=0 // loop_footer
    %s13 = sadd.s32 1, %s9
  $region7: #{qa_head_pallas.1} parent=0 // loop_footer_branch
    %8 = sbr.rel target = $region3
  $region8: #{qa_head_pallas.1} parent=0 // loop_exit
    _

</llo_original>
